<compile_context>
chip_gen: v7x
topology: tpu7x:2x2x1
jax: 0.10.0
libtpu: 0.0.40
codegen_flags: <defaults>
</compile_context>

<pallas_src>
import functools

import jax
import jax.numpy as jnp
from jax import lax
from jax.experimental import pallas as pl
from jax.experimental.pallas import tpu as pltpu


def _round_up(n, m):
    return (n + m - 1) // m * m


def _bilstm_kernel(xcat_ref,   # (T*Bp, 2*nIn)  row block s = [x_s | x_{T-1-s}]
                   wih_ref,    # (2*nIn, 4*GP)  fwd rows -> fwd lanes, bwd rows -> bwd lanes
                   bih_ref,    # (1, 4*GP)      b_ih + b_hh, padded/permuted
                   whh_ref,    # (GP, 4*GP)     block-diagonal recurrent weights (padded)
                   wef_ref,    # (GP, nOutP)    Linear weights, fwd-lane rows only
                   web_ref,    # (GP, nOutP)    Linear weights, bwd-lane rows only
                   bemb_ref,   # (1, nOutP)
                   out_ref,    # (T*Bp, nOutP)
                   rec_f,      # scratch (T*Bp, GP)
                   rec_b,      # scratch (T*Bp, GP)
                   *, T, Bp):
    GP = whh_ref.shape[0]

    # Hoisted input projection: ONE MXU matmul covering both directions, all
    # four gates and every time step.  Row block s already pairs x_s (forward
    # lanes) with x_{T-1-s} (backward lanes), so the recurrence below consumes
    # one 8-row, 4-vreg-aligned slice per step -- no lane shuffles.
    xg = jnp.dot(xcat_ref[...], wih_ref[...],
                 preferred_element_type=jnp.float32) + bih_ref[...]

    whh = whh_ref[...]
    h = jnp.zeros((Bp, GP), jnp.float32)   # lanes [0:H]=fwd h, [H:2H]=bwd h, rest 0
    c = jnp.zeros((Bp, GP), jnp.float32)

    # Fused forward/backward recurrence: per step, ONE block-diagonal
    # (Bp,GP)x(GP,4GP) matmul and three batched, vreg-aligned EUP activations.
    # Unrolled at trace time: T is static and small.
    # TODO(synk): switch to lax.fori_loop + pl.ds slices if T grows beyond ~32.
    for s in range(T):
        r0 = s * Bp
        gates = xg[r0:r0 + Bp, :] + jnp.dot(h, whh,
                                            preferred_element_type=jnp.float32)
        ifo = jax.nn.sigmoid(gates[:, :3 * GP])   # [i | f | o], each a full vreg
        g = jnp.tanh(gates[:, 3 * GP:])           # [g]
        c = ifo[:, GP:2 * GP] * c + ifo[:, :GP] * g
        h = ifo[:, 2 * GP:] * jnp.tanh(c)
        rec_f[r0:r0 + Bp, :] = h                  # fwd lanes valid for time s
        rb = (T - 1 - s) * Bp
        rec_b[rb:rb + Bp, :] = h                  # bwd lanes valid for time T-1-s

    # Output Linear (hoisted, lane-dense): zero rows of wef/web mask out the
    # wrong-direction and padding lanes stored in rec_f / rec_b.
    out = (jnp.dot(rec_f[...], wef_ref[...], preferred_element_type=jnp.float32)
           + jnp.dot(rec_b[...], web_ref[...], preferred_element_type=jnp.float32)
           + bemb_ref[...])
    out_ref[...] = out.astype(out_ref.dtype)


def bidirectional_lstm(x, params):
    """x: (T, B, nIn) float32 -> (T, B, nOut) float32."""
    T, B, nIn = x.shape
    H = params['whh_f'].shape[0]
    nOut = params['wemb'].shape[0]

    Bp = _round_up(B, 8)                      # sublane-aligned batch
    GP = _round_up(max(2 * H, 128), 128)      # padded width of one gate group
    nOutP = _round_up(max(nOut, 128), 128)    # lane-dense output slab

    # ---- wrapper-side layout plumbing (done once, outside the kernel) ----
    if Bp != B:
        x = jnp.pad(x, ((0, 0), (0, Bp - B), (0, 0)))
    # Pair x_t (forward) with x_{T-1-t} (backward) so each recurrence step reads
    # one contiguous, aligned row block of the precomputed gates.
    x_cat = jnp.concatenate([x, x[::-1]], axis=-1).reshape(T * Bp, 2 * nIn)

    # Gate packing: padded group order [i, f, o, g]; inside each GP-wide group
    # lanes [0:H] are forward, [H:2H] backward, the rest zero.  Source columns
    # use the PyTorch order [i, f, g, o].
    src = {'i': 0, 'f': 1, 'g': 2, 'o': 3}
    order = ('i', 'f', 'o', 'g')

    def pack_gate_cols(w_f, w_b, n_rows, rows_f, rows_b):
        w = jnp.zeros((n_rows, 4 * GP), jnp.float32)
        for k, name in enumerate(order):
            j = src[name] * H
            w = w.at[rows_f, k * GP:k * GP + H].set(w_f[:, j:j + H])
            w = w.at[rows_b, k * GP + H:k * GP + 2 * H].set(w_b[:, j:j + H])
        return w

    wih_p = pack_gate_cols(params['wih_f'], params['wih_b'],
                           2 * nIn, slice(0, nIn), slice(nIn, 2 * nIn))
    whh_p = pack_gate_cols(params['whh_f'], params['whh_b'],
                           GP, slice(0, H), slice(H, 2 * H))
    bih_p = pack_gate_cols(params['b_f'], params['b_b'],
                           1, slice(0, 1), slice(0, 1))

    # Linear(2H, nOut): per-direction weights placed on their own lane rows.
    wemb = params['wemb']                                     # (nOut, 2H)
    wef = jnp.zeros((GP, nOutP), jnp.float32).at[:H, :nOut].set(wemb[:, :H].T)
    web = jnp.zeros((GP, nOutP), jnp.float32).at[H:2 * H, :nOut].set(wemb[:, H:].T)
    bemb_p = jnp.zeros((1, nOutP), jnp.float32).at[:, :nOut].set(params['bemb'])

    vmem = pl.BlockSpec(memory_space=pltpu.MemorySpace.VMEM)
    # Grid-less: everything is VMEM-resident at these sizes.
    # TODO(synk): for large B, tile the batch with a ("parallel",) grid so v7x's
    # second TensorCore is used and its 64 MiB VMEM budget is respected.
    out2d = pl.pallas_call(
        functools.partial(_bilstm_kernel, T=T, Bp=Bp),
        out_shape=jax.ShapeDtypeStruct((T * Bp, nOutP), jnp.float32),
        in_specs=[vmem] * 7,
        out_specs=vmem,
        scratch_shapes=[pltpu.VMEM((T * Bp, GP), jnp.float32),
                        pltpu.VMEM((T * Bp, GP), jnp.float32)],
    )(x_cat, wih_p, bih_p, whh_p, wef, web, bemb_p)

    return out2d.reshape(T, Bp, nOutP)[:, :B, :nOut]


# ------------------------- parameter init (deterministic) -------------------------
def init_params(key, nIn, nHidden, nOut):
    ks = jax.random.split(key, 10)
    k_lstm = 1.0 / jnp.sqrt(nHidden)
    k_lin = 1.0 / jnp.sqrt(2 * nHidden)

    def u(k, shape, bound):
        return jax.random.uniform(k, shape, jnp.float32, -bound, bound)

    # PyTorch stores weight_ih: (4H, nIn), weight_hh: (4H, H).  We pre-transpose
    # so the kernel does x @ W directly, and fold the two biases together.
    params = {
        'wih_f': u(ks[0], (nIn, 4 * nHidden), k_lstm),
        'whh_f': u(ks[1], (nHidden, 4 * nHidden), k_lstm),
        'b_f': u(ks[2], (1, 4 * nHidden), k_lstm) + u(ks[3], (1, 4 * nHidden), k_lstm),
        'wih_b': u(ks[4], (nIn, 4 * nHidden), k_lstm),
        'whh_b': u(ks[5], (nHidden, 4 * nHidden), k_lstm),
        'b_b': u(ks[6], (1, 4 * nHidden), k_lstm) + u(ks[7], (1, 4 * nHidden), k_lstm),
        'wemb': u(ks[8], (nOut, 2 * nHidden), k_lin),
        'bemb': u(ks[9], (1, nOut), k_lin),
    }
    return params


# ------------------------- pure-JAX reference for validation -------------------------
def _ref_lstm_dir(x, wih, whh, bias, H, reverse=False):
    def step(carry, x_t):
        h, c = carry
        gates = x_t @ wih + h @ whh + bias
        i = jax.nn.sigmoid(gates[:, :H])
        f = jax.nn.sigmoid(gates[:, H:2 * H])
        g = jnp.tanh(gates[:, 2 * H:3 * H])
        o = jax.nn.sigmoid(gates[:, 3 * H:])
        c = f * c + i * g
        h = o * jnp.tanh(c)
        return (h, c), h

    B = x.shape[1]
    xs = x[::-1] if reverse else x
    init = (jnp.zeros((B, H), jnp.float32), jnp.zeros((B, H), jnp.float32))
    _, hs = lax.scan(step, init, xs)
    return hs[::-1] if reverse else hs


def reference(x, params):
    H = params['whh_f'].shape[0]
    hf = _ref_lstm_dir(x, params['wih_f'], params['whh_f'], params['b_f'], H)
    hb = _ref_lstm_dir(x, params['wih_b'], params['whh_b'], params['b_b'], H, reverse=True)
    rec = jnp.concatenate([hf, hb], axis=-1)            # (T, B, 2H)
    T, B, h2 = rec.shape
    out = rec.reshape(T * B, h2) @ params['wemb'].T + params['bemb'][0]
    return out.reshape(T, B, -1)


if __name__ == "__main__":
    T, B, nIn, nHidden, nOut = 8, 2, 16, 32, 8

    key = jax.random.PRNGKey(0)
    kx, kp = jax.random.split(key)
    x = jax.random.normal(kx, (T, B, nIn), jnp.float32)
    params = init_params(kp, nIn, nHidden, nOut)

    out = bidirectional_lstm(x, params)
    out = jax.block_until_ready(out)

    ref = reference(x, params)
    assert out.shape == (T, B, nOut)
    assert jnp.allclose(out, ref, atol=1e-3, rtol=1e-3), \
        f"max diff {jnp.max(jnp.abs(out - ref))}"

    print("KERNEL_OK")
</pallas_src>

<mosaic_0001>
module attributes {stable_mosaic.version = 11 : i64} {
  func.func @_bilstm_kernel(%arg0: memref<64x32xf32, #tpu.memory_space<vmem>>, %arg1: memref<32x512xf32, #tpu.memory_space<vmem>>, %arg2: memref<1x512xf32, #tpu.memory_space<vmem>>, %arg3: memref<128x512xf32, #tpu.memory_space<vmem>>, %arg4: memref<128x128xf32, #tpu.memory_space<vmem>>, %arg5: memref<128x128xf32, #tpu.memory_space<vmem>>, %arg6: memref<1x128xf32, #tpu.memory_space<vmem>>, %arg7: memref<64x128xf32, #tpu.memory_space<vmem>>, %arg8: memref<64x128xf32, #tpu.memory_space<vmem>>, %arg9: memref<64x128xf32, #tpu.memory_space<vmem>>) attributes {dimension_semantics = [], scalar_prefetch = 0 : i64, scratch_operands = 2 : i64, tpu.core_type = #tpu.core_type<tc>} {
    %c0 = arith.constant 0 : index
    %c0_0 = arith.constant 0 : index
    %0 = vector.load %arg0[%c0, %c0_0] : memref<64x32xf32, #tpu.memory_space<vmem>>, vector<64x32xf32>
    %c0_1 = arith.constant 0 : index
    %c0_2 = arith.constant 0 : index
    %1 = vector.load %arg1[%c0_1, %c0_2] : memref<32x512xf32, #tpu.memory_space<vmem>>, vector<32x512xf32>
    %cst = arith.constant dense<0.000000e+00> : vector<64x512xf32>
    %2 = tpu.matmul %0, %1, %cst {dimension_numbers = #tpu.dot_dimension_numbers<[1], [0], [0], [1], [0, 0, 1, 1], [], []>} : vector<64x32xf32>, vector<32x512xf32>, vector<64x512xf32> -> vector<64x512xf32>
    %c0_3 = arith.constant 0 : index
    %c0_4 = arith.constant 0 : index
    %3 = vector.load %arg2[%c0_3, %c0_4] : memref<1x512xf32, #tpu.memory_space<vmem>>, vector<1x512xf32>
    %4 = vector.broadcast %3 : vector<1x512xf32> to vector<64x512xf32>
    %5 = arith.addf %2, %4 : vector<64x512xf32>
    %c0_5 = arith.constant 0 : index
    %c0_6 = arith.constant 0 : index
    %6 = vector.load %arg3[%c0_5, %c0_6] : memref<128x512xf32, #tpu.memory_space<vmem>>, vector<128x512xf32>
    %cst_7 = arith.constant 0.000000e+00 : f32
    %7 = vector.broadcast %cst_7 : f32 to vector<8x128xf32>
    %cst_8 = arith.constant 0.000000e+00 : f32
    %8 = vector.broadcast %cst_8 : f32 to vector<8x128xf32>
    %9 = vector.extract_strided_slice %5 {offsets = [0, 0], sizes = [8, 512], strides = [1, 1]} : vector<64x512xf32> to vector<8x512xf32>
    %cst_9 = arith.constant dense<0.000000e+00> : vector<8x512xf32>
    %10 = tpu.matmul %7, %6, %cst_9 {dimension_numbers = #tpu.dot_dimension_numbers<[1], [0], [0], [1], [0, 0, 1, 1], [], []>} : vector<8x128xf32>, vector<128x512xf32>, vector<8x512xf32> -> vector<8x512xf32>
    %11 = arith.addf %9, %10 : vector<8x512xf32>
    %12 = vector.extract_strided_slice %11 {offsets = [0, 0], sizes = [8, 384], strides = [1, 1]} : vector<8x512xf32> to vector<8x384xf32>
    %13 = arith.negf %12 : vector<8x384xf32>
    %14 = math.exp %13 : vector<8x384xf32>
    %cst_10 = arith.constant 1.000000e+00 : f32
    %15 = vector.broadcast %cst_10 : f32 to vector<8x384xf32>
    %16 = arith.addf %15, %14 : vector<8x384xf32>
    %17 = arith.divf %15, %16 : vector<8x384xf32>
    %18 = vector.extract_strided_slice %11 {offsets = [0, 384], sizes = [8, 128], strides = [1, 1]} : vector<8x512xf32> to vector<8x128xf32>
    %19 = math.tanh %18 : vector<8x128xf32>
    %20 = vector.extract_strided_slice %17 {offsets = [0, 128], sizes = [8, 128], strides = [1, 1]} : vector<8x384xf32> to vector<8x128xf32>
    %21 = arith.mulf %20, %8 : vector<8x128xf32>
    %22 = vector.extract_strided_slice %17 {offsets = [0, 0], sizes = [8, 128], strides = [1, 1]} : vector<8x384xf32> to vector<8x128xf32>
    %23 = arith.mulf %22, %19 : vector<8x128xf32>
    %24 = arith.addf %21, %23 : vector<8x128xf32>
    %25 = vector.extract_strided_slice %17 {offsets = [0, 256], sizes = [8, 128], strides = [1, 1]} : vector<8x384xf32> to vector<8x128xf32>
    %26 = math.tanh %24 : vector<8x128xf32>
    %27 = arith.mulf %25, %26 : vector<8x128xf32>
    %c0_11 = arith.constant 0 : index
    %c0_12 = arith.constant 0 : index
    %28 = vector.load %arg8[%c0_11, %c0_12] : memref<64x128xf32, #tpu.memory_space<vmem>>, vector<8x128xf32>
    tpu.vector_store %arg8[%c0_11, %c0_12], %27 {strides = array<i32>} : memref<64x128xf32, #tpu.memory_space<vmem>>, vector<8x128xf32>,
    %c56 = arith.constant 56 : index
    %c0_13 = arith.constant 0 : index
    %29 = vector.load %arg9[%c56, %c0_13] : memref<64x128xf32, #tpu.memory_space<vmem>>, vector<8x128xf32>
    tpu.vector_store %arg9[%c56, %c0_13], %27 {strides = array<i32>} : memref<64x128xf32, #tpu.memory_space<vmem>>, vector<8x128xf32>,
    %30 = vector.extract_strided_slice %5 {offsets = [8, 0], sizes = [8, 512], strides = [1, 1]} : vector<64x512xf32> to vector<8x512xf32>
    %cst_14 = arith.constant dense<0.000000e+00> : vector<8x512xf32>
    %31 = tpu.matmul %27, %6, %cst_14 {dimension_numbers = #tpu.dot_dimension_numbers<[1], [0], [0], [1], [0, 0, 1, 1], [], []>} : vector<8x128xf32>, vector<128x512xf32>, vector<8x512xf32> -> vector<8x512xf32>
    %32 = arith.addf %30, %31 : vector<8x512xf32>
    %33 = vector.extract_strided_slice %32 {offsets = [0, 0], sizes = [8, 384], strides = [1, 1]} : vector<8x512xf32> to vector<8x384xf32>
    %34 = arith.negf %33 : vector<8x384xf32>
    %35 = math.exp %34 : vector<8x384xf32>
    %cst_15 = arith.constant 1.000000e+00 : f32
    %36 = vector.broadcast %cst_15 : f32 to vector<8x384xf32>
    %37 = arith.addf %36, %35 : vector<8x384xf32>
    %38 = arith.divf %36, %37 : vector<8x384xf32>
    %39 = vector.extract_strided_slice %32 {offsets = [0, 384], sizes = [8, 128], strides = [1, 1]} : vector<8x512xf32> to vector<8x128xf32>
    %40 = math.tanh %39 : vector<8x128xf32>
    %41 = vector.extract_strided_slice %38 {offsets = [0, 128], sizes = [8, 128], strides = [1, 1]} : vector<8x384xf32> to vector<8x128xf32>
    %42 = arith.mulf %41, %24 : vector<8x128xf32>
    %43 = vector.extract_strided_slice %38 {offsets = [0, 0], sizes = [8, 128], strides = [1, 1]} : vector<8x384xf32> to vector<8x128xf32>
    %44 = arith.mulf %43, %40 : vector<8x128xf32>
    %45 = arith.addf %42, %44 : vector<8x128xf32>
    %46 = vector.extract_strided_slice %38 {offsets = [0, 256], sizes = [8, 128], strides = [1, 1]} : vector<8x384xf32> to vector<8x128xf32>
    %47 = math.tanh %45 : vector<8x128xf32>
    %48 = arith.mulf %46, %47 : vector<8x128xf32>
    %c8 = arith.constant 8 : index
    %c0_16 = arith.constant 0 : index
    %49 = vector.load %arg8[%c8, %c0_16] : memref<64x128xf32, #tpu.memory_space<vmem>>, vector<8x128xf32>
    tpu.vector_store %arg8[%c8, %c0_16], %48 {strides = array<i32>} : memref<64x128xf32, #tpu.memory_space<vmem>>, vector<8x128xf32>,
    %c48 = arith.constant 48 : index
    %c0_17 = arith.constant 0 : index
    %50 = vector.load %arg9[%c48, %c0_17] : memref<64x128xf32, #tpu.memory_space<vmem>>, vector<8x128xf32>
    tpu.vector_store %arg9[%c48, %c0_17], %48 {strides = array<i32>} : memref<64x128xf32, #tpu.memory_space<vmem>>, vector<8x128xf32>,
    %51 = vector.extract_strided_slice %5 {offsets = [16, 0], sizes = [8, 512], strides = [1, 1]} : vector<64x512xf32> to vector<8x512xf32>
    %cst_18 = arith.constant dense<0.000000e+00> : vector<8x512xf32>
    %52 = tpu.matmul %48, %6, %cst_18 {dimension_numbers = #tpu.dot_dimension_numbers<[1], [0], [0], [1], [0, 0, 1, 1], [], []>} : vector<8x128xf32>, vector<128x512xf32>, vector<8x512xf32> -> vector<8x512xf32>
    %53 = arith.addf %51, %52 : vector<8x512xf32>
    %54 = vector.extract_strided_slice %53 {offsets = [0, 0], sizes = [8, 384], strides = [1, 1]} : vector<8x512xf32> to vector<8x384xf32>
    %55 = arith.negf %54 : vector<8x384xf32>
    %56 = math.exp %55 : vector<8x384xf32>
    %cst_19 = arith.constant 1.000000e+00 : f32
    %57 = vector.broadcast %cst_19 : f32 to vector<8x384xf32>
    %58 = arith.addf %57, %56 : vector<8x384xf32>
    %59 = arith.divf %57, %58 : vector<8x384xf32>
    %60 = vector.extract_strided_slice %53 {offsets = [0, 384], sizes = [8, 128], strides = [1, 1]} : vector<8x512xf32> to vector<8x128xf32>
    %61 = math.tanh %60 : vector<8x128xf32>
    %62 = vector.extract_strided_slice %59 {offsets = [0, 128], sizes = [8, 128], strides = [1, 1]} : vector<8x384xf32> to vector<8x128xf32>
    %63 = arith.mulf %62, %45 : vector<8x128xf32>
    %64 = vector.extract_strided_slice %59 {offsets = [0, 0], sizes = [8, 128], strides = [1, 1]} : vector<8x384xf32> to vector<8x128xf32>
    %65 = arith.mulf %64, %61 : vector<8x128xf32>
    %66 = arith.addf %63, %65 : vector<8x128xf32>
    %67 = vector.extract_strided_slice %59 {offsets = [0, 256], sizes = [8, 128], strides = [1, 1]} : vector<8x384xf32> to vector<8x128xf32>
    %68 = math.tanh %66 : vector<8x128xf32>
    %69 = arith.mulf %67, %68 : vector<8x128xf32>
    %c16 = arith.constant 16 : index
    %c0_20 = arith.constant 0 : index
    %70 = vector.load %arg8[%c16, %c0_20] : memref<64x128xf32, #tpu.memory_space<vmem>>, vector<8x128xf32>
    tpu.vector_store %arg8[%c16, %c0_20], %69 {strides = array<i32>} : memref<64x128xf32, #tpu.memory_space<vmem>>, vector<8x128xf32>,
    %c40 = arith.constant 40 : index
    %c0_21 = arith.constant 0 : index
    %71 = vector.load %arg9[%c40, %c0_21] : memref<64x128xf32, #tpu.memory_space<vmem>>, vector<8x128xf32>
    tpu.vector_store %arg9[%c40, %c0_21], %69 {strides = array<i32>} : memref<64x128xf32, #tpu.memory_space<vmem>>, vector<8x128xf32>,
    %72 = vector.extract_strided_slice %5 {offsets = [24, 0], sizes = [8, 512], strides = [1, 1]} : vector<64x512xf32> to vector<8x512xf32>
    %cst_22 = arith.constant dense<0.000000e+00> : vector<8x512xf32>
    %73 = tpu.matmul %69, %6, %cst_22 {dimension_numbers = #tpu.dot_dimension_numbers<[1], [0], [0], [1], [0, 0, 1, 1], [], []>} : vector<8x128xf32>, vector<128x512xf32>, vector<8x512xf32> -> vector<8x512xf32>
    %74 = arith.addf %72, %73 : vector<8x512xf32>
    %75 = vector.extract_strided_slice %74 {offsets = [0, 0], sizes = [8, 384], strides = [1, 1]} : vector<8x512xf32> to vector<8x384xf32>
    %76 = arith.negf %75 : vector<8x384xf32>
    %77 = math.exp %76 : vector<8x384xf32>
    %cst_23 = arith.constant 1.000000e+00 : f32
    %78 = vector.broadcast %cst_23 : f32 to vector<8x384xf32>
    %79 = arith.addf %78, %77 : vector<8x384xf32>
    %80 = arith.divf %78, %79 : vector<8x384xf32>
    %81 = vector.extract_strided_slice %74 {offsets = [0, 384], sizes = [8, 128], strides = [1, 1]} : vector<8x512xf32> to vector<8x128xf32>
    %82 = math.tanh %81 : vector<8x128xf32>
    %83 = vector.extract_strided_slice %80 {offsets = [0, 128], sizes = [8, 128], strides = [1, 1]} : vector<8x384xf32> to vector<8x128xf32>
    %84 = arith.mulf %83, %66 : vector<8x128xf32>
    %85 = vector.extract_strided_slice %80 {offsets = [0, 0], sizes = [8, 128], strides = [1, 1]} : vector<8x384xf32> to vector<8x128xf32>
    %86 = arith.mulf %85, %82 : vector<8x128xf32>
    %87 = arith.addf %84, %86 : vector<8x128xf32>
    %88 = vector.extract_strided_slice %80 {offsets = [0, 256], sizes = [8, 128], strides = [1, 1]} : vector<8x384xf32> to vector<8x128xf32>
    %89 = math.tanh %87 : vector<8x128xf32>
    %90 = arith.mulf %88, %89 : vector<8x128xf32>
    %c24 = arith.constant 24 : index
    %c0_24 = arith.constant 0 : index
    %91 = vector.load %arg8[%c24, %c0_24] : memref<64x128xf32, #tpu.memory_space<vmem>>, vector<8x128xf32>
    tpu.vector_store %arg8[%c24, %c0_24], %90 {strides = array<i32>} : memref<64x128xf32, #tpu.memory_space<vmem>>, vector<8x128xf32>,
    %c32 = arith.constant 32 : index
    %c0_25 = arith.constant 0 : index
    %92 = vector.load %arg9[%c32, %c0_25] : memref<64x128xf32, #tpu.memory_space<vmem>>, vector<8x128xf32>
    tpu.vector_store %arg9[%c32, %c0_25], %90 {strides = array<i32>} : memref<64x128xf32, #tpu.memory_space<vmem>>, vector<8x128xf32>,
    %93 = vector.extract_strided_slice %5 {offsets = [32, 0], sizes = [8, 512], strides = [1, 1]} : vector<64x512xf32> to vector<8x512xf32>
    %cst_26 = arith.constant dense<0.000000e+00> : vector<8x512xf32>
    %94 = tpu.matmul %90, %6, %cst_26 {dimension_numbers = #tpu.dot_dimension_numbers<[1], [0], [0], [1], [0, 0, 1, 1], [], []>} : vector<8x128xf32>, vector<128x512xf32>, vector<8x512xf32> -> vector<8x512xf32>
    %95 = arith.addf %93, %94 : vector<8x512xf32>
    %96 = vector.extract_strided_slice %95 {offsets = [0, 0], sizes = [8, 384], strides = [1, 1]} : vector<8x512xf32> to vector<8x384xf32>
    %97 = arith.negf %96 : vector<8x384xf32>
    %98 = math.exp %97 : vector<8x384xf32>
    %cst_27 = arith.constant 1.000000e+00 : f32
    %99 = vector.broadcast %cst_27 : f32 to vector<8x384xf32>
    %100 = arith.addf %99, %98 : vector<8x384xf32>
    %101 = arith.divf %99, %100 : vector<8x384xf32>
    %102 = vector.extract_strided_slice %95 {offsets = [0, 384], sizes = [8, 128], strides = [1, 1]} : vector<8x512xf32> to vector<8x128xf32>
    %103 = math.tanh %102 : vector<8x128xf32>
    %104 = vector.extract_strided_slice %101 {offsets = [0, 128], sizes = [8, 128], strides = [1, 1]} : vector<8x384xf32> to vector<8x128xf32>
    %105 = arith.mulf %104, %87 : vector<8x128xf32>
    %106 = vector.extract_strided_slice %101 {offsets = [0, 0], sizes = [8, 128], strides = [1, 1]} : vector<8x384xf32> to vector<8x128xf32>
    %107 = arith.mulf %106, %103 : vector<8x128xf32>
    %108 = arith.addf %105, %107 : vector<8x128xf32>
    %109 = vector.extract_strided_slice %101 {offsets = [0, 256], sizes = [8, 128], strides = [1, 1]} : vector<8x384xf32> to vector<8x128xf32>
    %110 = math.tanh %108 : vector<8x128xf32>
    %111 = arith.mulf %109, %110 : vector<8x128xf32>
    %c32_28 = arith.constant 32 : index
    %c0_29 = arith.constant 0 : index
    %112 = vector.load %arg8[%c32_28, %c0_29] : memref<64x128xf32, #tpu.memory_space<vmem>>, vector<8x128xf32>
    tpu.vector_store %arg8[%c32_28, %c0_29], %111 {strides = array<i32>} : memref<64x128xf32, #tpu.memory_space<vmem>>, vector<8x128xf32>,
    %c24_30 = arith.constant 24 : index
    %c0_31 = arith.constant 0 : index
    %113 = vector.load %arg9[%c24_30, %c0_31] : memref<64x128xf32, #tpu.memory_space<vmem>>, vector<8x128xf32>
    tpu.vector_store %arg9[%c24_30, %c0_31], %111 {strides = array<i32>} : memref<64x128xf32, #tpu.memory_space<vmem>>, vector<8x128xf32>,
    %114 = vector.extract_strided_slice %5 {offsets = [40, 0], sizes = [8, 512], strides = [1, 1]} : vector<64x512xf32> to vector<8x512xf32>
    %cst_32 = arith.constant dense<0.000000e+00> : vector<8x512xf32>
    %115 = tpu.matmul %111, %6, %cst_32 {dimension_numbers = #tpu.dot_dimension_numbers<[1], [0], [0], [1], [0, 0, 1, 1], [], []>} : vector<8x128xf32>, vector<128x512xf32>, vector<8x512xf32> -> vector<8x512xf32>
    %116 = arith.addf %114, %115 : vector<8x512xf32>
    %117 = vector.extract_strided_slice %116 {offsets = [0, 0], sizes = [8, 384], strides = [1, 1]} : vector<8x512xf32> to vector<8x384xf32>
    %118 = arith.negf %117 : vector<8x384xf32>
    %119 = math.exp %118 : vector<8x384xf32>
    %cst_33 = arith.constant 1.000000e+00 : f32
    %120 = vector.broadcast %cst_33 : f32 to vector<8x384xf32>
    %121 = arith.addf %120, %119 : vector<8x384xf32>
    %122 = arith.divf %120, %121 : vector<8x384xf32>
    %123 = vector.extract_strided_slice %116 {offsets = [0, 384], sizes = [8, 128], strides = [1, 1]} : vector<8x512xf32> to vector<8x128xf32>
    %124 = math.tanh %123 : vector<8x128xf32>
    %125 = vector.extract_strided_slice %122 {offsets = [0, 128], sizes = [8, 128], strides = [1, 1]} : vector<8x384xf32> to vector<8x128xf32>
    %126 = arith.mulf %125, %108 : vector<8x128xf32>
    %127 = vector.extract_strided_slice %122 {offsets = [0, 0], sizes = [8, 128], strides = [1, 1]} : vector<8x384xf32> to vector<8x128xf32>
    %128 = arith.mulf %127, %124 : vector<8x128xf32>
    %129 = arith.addf %126, %128 : vector<8x128xf32>
    %130 = vector.extract_strided_slice %122 {offsets = [0, 256], sizes = [8, 128], strides = [1, 1]} : vector<8x384xf32> to vector<8x128xf32>
    %131 = math.tanh %129 : vector<8x128xf32>
    %132 = arith.mulf %130, %131 : vector<8x128xf32>
    %c40_34 = arith.constant 40 : index
    %c0_35 = arith.constant 0 : index
    %133 = vector.load %arg8[%c40_34, %c0_35] : memref<64x128xf32, #tpu.memory_space<vmem>>, vector<8x128xf32>
    tpu.vector_store %arg8[%c40_34, %c0_35], %132 {strides = array<i32>} : memref<64x128xf32, #tpu.memory_space<vmem>>, vector<8x128xf32>,
    %c16_36 = arith.constant 16 : index
    %c0_37 = arith.constant 0 : index
    %134 = vector.load %arg9[%c16_36, %c0_37] : memref<64x128xf32, #tpu.memory_space<vmem>>, vector<8x128xf32>
    tpu.vector_store %arg9[%c16_36, %c0_37], %132 {strides = array<i32>} : memref<64x128xf32, #tpu.memory_space<vmem>>, vector<8x128xf32>,
    %135 = vector.extract_strided_slice %5 {offsets = [48, 0], sizes = [8, 512], strides = [1, 1]} : vector<64x512xf32> to vector<8x512xf32>
    %cst_38 = arith.constant dense<0.000000e+00> : vector<8x512xf32>
    %136 = tpu.matmul %132, %6, %cst_38 {dimension_numbers = #tpu.dot_dimension_numbers<[1], [0], [0], [1], [0, 0, 1, 1], [], []>} : vector<8x128xf32>, vector<128x512xf32>, vector<8x512xf32> -> vector<8x512xf32>
    %137 = arith.addf %135, %136 : vector<8x512xf32>
    %138 = vector.extract_strided_slice %137 {offsets = [0, 0], sizes = [8, 384], strides = [1, 1]} : vector<8x512xf32> to vector<8x384xf32>
    %139 = arith.negf %138 : vector<8x384xf32>
    %140 = math.exp %139 : vector<8x384xf32>
    %cst_39 = arith.constant 1.000000e+00 : f32
    %141 = vector.broadcast %cst_39 : f32 to vector<8x384xf32>
    %142 = arith.addf %141, %140 : vector<8x384xf32>
    %143 = arith.divf %141, %142 : vector<8x384xf32>
    %144 = vector.extract_strided_slice %137 {offsets = [0, 384], sizes = [8, 128], strides = [1, 1]} : vector<8x512xf32> to vector<8x128xf32>
    %145 = math.tanh %144 : vector<8x128xf32>
    %146 = vector.extract_strided_slice %143 {offsets = [0, 128], sizes = [8, 128], strides = [1, 1]} : vector<8x384xf32> to vector<8x128xf32>
    %147 = arith.mulf %146, %129 : vector<8x128xf32>
    %148 = vector.extract_strided_slice %143 {offsets = [0, 0], sizes = [8, 128], strides = [1, 1]} : vector<8x384xf32> to vector<8x128xf32>
    %149 = arith.mulf %148, %145 : vector<8x128xf32>
    %150 = arith.addf %147, %149 : vector<8x128xf32>
    %151 = vector.extract_strided_slice %143 {offsets = [0, 256], sizes = [8, 128], strides = [1, 1]} : vector<8x384xf32> to vector<8x128xf32>
    %152 = math.tanh %150 : vector<8x128xf32>
    %153 = arith.mulf %151, %152 : vector<8x128xf32>
    %c48_40 = arith.constant 48 : index
    %c0_41 = arith.constant 0 : index
    %154 = vector.load %arg8[%c48_40, %c0_41] : memref<64x128xf32, #tpu.memory_space<vmem>>, vector<8x128xf32>
    tpu.vector_store %arg8[%c48_40, %c0_41], %153 {strides = array<i32>} : memref<64x128xf32, #tpu.memory_space<vmem>>, vector<8x128xf32>,
    %c8_42 = arith.constant 8 : index
    %c0_43 = arith.constant 0 : index
    %155 = vector.load %arg9[%c8_42, %c0_43] : memref<64x128xf32, #tpu.memory_space<vmem>>, vector<8x128xf32>
    tpu.vector_store %arg9[%c8_42, %c0_43], %153 {strides = array<i32>} : memref<64x128xf32, #tpu.memory_space<vmem>>, vector<8x128xf32>,
    %156 = vector.extract_strided_slice %5 {offsets = [56, 0], sizes = [8, 512], strides = [1, 1]} : vector<64x512xf32> to vector<8x512xf32>
    %cst_44 = arith.constant dense<0.000000e+00> : vector<8x512xf32>
    %157 = tpu.matmul %153, %6, %cst_44 {dimension_numbers = #tpu.dot_dimension_numbers<[1], [0], [0], [1], [0, 0, 1, 1], [], []>} : vector<8x128xf32>, vector<128x512xf32>, vector<8x512xf32> -> vector<8x512xf32>
    %158 = arith.addf %156, %157 : vector<8x512xf32>
    %159 = vector.extract_strided_slice %158 {offsets = [0, 0], sizes = [8, 384], strides = [1, 1]} : vector<8x512xf32> to vector<8x384xf32>
    %160 = arith.negf %159 : vector<8x384xf32>
    %161 = math.exp %160 : vector<8x384xf32>
    %cst_45 = arith.constant 1.000000e+00 : f32
    %162 = vector.broadcast %cst_45 : f32 to vector<8x384xf32>
    %163 = arith.addf %162, %161 : vector<8x384xf32>
    %164 = arith.divf %162, %163 : vector<8x384xf32>
    %165 = vector.extract_strided_slice %158 {offsets = [0, 384], sizes = [8, 128], strides = [1, 1]} : vector<8x512xf32> to vector<8x128xf32>
    %166 = math.tanh %165 : vector<8x128xf32>
    %167 = vector.extract_strided_slice %164 {offsets = [0, 128], sizes = [8, 128], strides = [1, 1]} : vector<8x384xf32> to vector<8x128xf32>
    %168 = arith.mulf %167, %150 : vector<8x128xf32>
    %169 = vector.extract_strided_slice %164 {offsets = [0, 0], sizes = [8, 128], strides = [1, 1]} : vector<8x384xf32> to vector<8x128xf32>
    %170 = arith.mulf %169, %166 : vector<8x128xf32>
    %171 = arith.addf %168, %170 : vector<8x128xf32>
    %172 = vector.extract_strided_slice %164 {offsets = [0, 256], sizes = [8, 128], strides = [1, 1]} : vector<8x384xf32> to vector<8x128xf32>
    %173 = math.tanh %171 : vector<8x128xf32>
    %174 = arith.mulf %172, %173 : vector<8x128xf32>
    %c56_46 = arith.constant 56 : index
    %c0_47 = arith.constant 0 : index
    %175 = vector.load %arg8[%c56_46, %c0_47] : memref<64x128xf32, #tpu.memory_space<vmem>>, vector<8x128xf32>
    tpu.vector_store %arg8[%c56_46, %c0_47], %174 {strides = array<i32>} : memref<64x128xf32, #tpu.memory_space<vmem>>, vector<8x128xf32>,
    %c0_48 = arith.constant 0 : index
    %c0_49 = arith.constant 0 : index
    %176 = vector.load %arg9[%c0_48, %c0_49] : memref<64x128xf32, #tpu.memory_space<vmem>>, vector<8x128xf32>
    tpu.vector_store %arg9[%c0_48, %c0_49], %174 {strides = array<i32>} : memref<64x128xf32, #tpu.memory_space<vmem>>, vector<8x128xf32>,
    %c0_50 = arith.constant 0 : index
    %c0_51 = arith.constant 0 : index
    %177 = vector.load %arg8[%c0_50, %c0_51] : memref<64x128xf32, #tpu.memory_space<vmem>>, vector<64x128xf32>
    %c0_52 = arith.constant 0 : index
    %c0_53 = arith.constant 0 : index
    %178 = vector.load %arg4[%c0_52, %c0_53] : memref<128x128xf32, #tpu.memory_space<vmem>>, vector<128x128xf32>
    %cst_54 = arith.constant dense<0.000000e+00> : vector<64x128xf32>
    %179 = tpu.matmul %177, %178, %cst_54 {dimension_numbers = #tpu.dot_dimension_numbers<[1], [0], [0], [1], [0, 0, 1, 1], [], []>} : vector<64x128xf32>, vector<128x128xf32>, vector<64x128xf32> -> vector<64x128xf32>
    %c0_55 = arith.constant 0 : index
    %c0_56 = arith.constant 0 : index
    %180 = vector.load %arg9[%c0_55, %c0_56] : memref<64x128xf32, #tpu.memory_space<vmem>>, vector<64x128xf32>
    %c0_57 = arith.constant 0 : index
    %c0_58 = arith.constant 0 : index
    %181 = vector.load %arg5[%c0_57, %c0_58] : memref<128x128xf32, #tpu.memory_space<vmem>>, vector<128x128xf32>
    %cst_59 = arith.constant dense<0.000000e+00> : vector<64x128xf32>
    %182 = tpu.matmul %180, %181, %cst_59 {dimension_numbers = #tpu.dot_dimension_numbers<[1], [0], [0], [1], [0, 0, 1, 1], [], []>} : vector<64x128xf32>, vector<128x128xf32>, vector<64x128xf32> -> vector<64x128xf32>
    %183 = arith.addf %179, %182 : vector<64x128xf32>
    %c0_60 = arith.constant 0 : index
    %c0_61 = arith.constant 0 : index
    %184 = vector.load %arg6[%c0_60, %c0_61] : memref<1x128xf32, #tpu.memory_space<vmem>>, vector<1x128xf32>
    %185 = vector.broadcast %184 : vector<1x128xf32> to vector<64x128xf32>
    %186 = arith.addf %183, %185 : vector<64x128xf32>
    %c0_62 = arith.constant 0 : index
    %c0_63 = arith.constant 0 : index
    %187 = vector.load %arg7[%c0_62, %c0_63] : memref<64x128xf32, #tpu.memory_space<vmem>>, vector<64x128xf32>
    tpu.vector_store %arg7[%c0_62, %c0_63], %186 {strides = array<i32>} : memref<64x128xf32, #tpu.memory_space<vmem>>, vector<64x128xf32>,
    return
  }
}

</mosaic_0001>

<llo_original>
// kernel: tpu_custom_call.1
$region0: #{tpu_custom_call.1}
  #allocation0 [shape = 'u32[]', space=smem, size = 0x4, offset = 0x4, fixed_abs, tag = 'smem constant byte address 0x4 - core index']
  #allocation1 [shape = 'u32[144,128]{1,0:T(1,128)}', space=vmem, size = 0x12000, scoped, tag = 'internal scratch']
  #allocation2 [shape = 'f32[64,128]{1,0:T(8,128)}', space=vmem, size = 0x8000, scoped, tag = 'scratch operand']
  #allocation3 [shape = 'f32[64,128]{1,0:T(8,128)}', space=vmem, size = 0x8000, scoped, tag = 'scratch operand']
  %s0 = inlined_call_operand.vmem [shape: f32[64,32], index: 0, kind: input, shape index: {}]
  %s1 = inlined_call_operand.hbm [shape: f32[32,512], index: 1, kind: input, shape index: {}]
  %s2 = inlined_call_operand.vmem [shape: f32[1,512], index: 2, kind: input, shape index: {}]
  %s3 = inlined_call_operand.hbm [shape: f32[128,512], index: 3, kind: input, shape index: {}]
  %s4 = inlined_call_operand.hbm [shape: f32[128,128], index: 4, kind: input, shape index: {}]
  %s5 = inlined_call_operand.hbm [shape: f32[128,128], index: 5, kind: input, shape index: {}]
  %s6 = inlined_call_operand.vmem [shape: f32[1,128], index: 6, kind: input, shape index: {}]
  %s7 = inlined_call_operand.hbm [shape: f32[64,128], index: 7, kind: output, shape index: {}]
  %s8 = sld [smem:[#allocation0]]
  $region54: #{tpu_custom_call.1} parent=0
    _
  %s10 = ssub.s32 1, %s8
  %s11 = scalar_select 0, %s10, %s8
  $region1: #{tpu_custom_call.1} parent=0
    #allocation4 [shape = 'u8[65536]{0}', space=vmem, size = 0x10000, scoped, tag = 'input window, operand 1, single buffered']
    #allocation5 [shape = 's32[1]{0}', space=sflag, size = 0x4, scoped, tag = 'scoped memory for tpu_custom_call.1']
    #allocation6 [shape = 's32[1]{0}', space=sflag, size = 0x4, scoped, tag = 'scoped memory for tpu_custom_call.1']
    #allocation7 [shape = 'u8[262144]{0}', space=vmem, size = 0x40000, scoped, tag = 'input window, operand 3, single buffered']
    #allocation8 [shape = 's32[1]{0}', space=sflag, size = 0x4, scoped, tag = 'scoped memory for tpu_custom_call.1']
    #allocation9 [shape = 'u8[65536]{0}', space=vmem, size = 0x10000, scoped, tag = 'input window, operand 4, single buffered']
    #allocation10 [shape = 'u8[65536]{0}', space=vmem, size = 0x10000, scoped, tag = 'input window, operand 5, single buffered']
    #allocation11 [shape = 's32[1]{0}', space=sflag, size = 0x4, scoped, tag = 'scoped memory for tpu_custom_call.1']
    #allocation12 [shape = 'u8[32768]{0}', space=vmem, size = 0x8000, scoped, tag = 'output window, operand 0, single buffered']
    %12 = vsyncpa [#allocation5], 0
    %13 = vsyncpa [#allocation8], 0
    %14 = vsyncpa [#allocation11], 0
    %15 = vsyncpa [#allocation6], 0
    // Predicated region
    $region2: #{tpu_custom_call.1} parent=1 // pred_check
      _
    $region3: #{tpu_custom_call.1} parent=1 // pred_check_branch
      %17 = sbr.rel (0) target = $region5
    $region4: #{tpu_custom_call.1} parent=1 // pred_region
      _
    $region5: #{tpu_custom_call.1} parent=1 // pred_fallthru
      _
    // Predicated region
    $region6: #{tpu_custom_call.1} parent=1 // pred_check
      _
    $region7: #{tpu_custom_call.1} parent=1 // pred_check_branch
      %19 = sbr.rel (0) target = $region9
    $region8: #{tpu_custom_call.1} parent=1 // pred_region
      %s21 = ssub.s32 2048, 2048
      %22 = vsyncadd [#allocation5], %s21
      %s23 = sshll.u32 [#allocation4], 4
      %s24 = int_to_ptr.vmem [resolvable:$true] %s23
      %29 = dma.hbm_to_vmem [thread:$0]  %s1, 2048, %s24, [#allocation5], 512, 512, 32
    $region9: #{tpu_custom_call.1} parent=1 // pred_fallthru
      _
    // Predicated region
    $region10: #{tpu_custom_call.1} parent=1 // pred_check
      _
    $region11: #{tpu_custom_call.1} parent=1 // pred_check_branch
      %31 = sbr.rel (0) target = $region13
    $region12: #{tpu_custom_call.1} parent=1 // pred_region
      _
    $region13: #{tpu_custom_call.1} parent=1 // pred_fallthru
      _
    // Predicated region
    $region14: #{tpu_custom_call.1} parent=1 // pred_check
      _
    $region15: #{tpu_custom_call.1} parent=1 // pred_check_branch
      %33 = sbr.rel (0) target = $region17
    $region16: #{tpu_custom_call.1} parent=1 // pred_region
      %s35 = ssub.s32 8192, 8192
      %36 = vsyncadd [#allocation8], %s35
      %s37 = sshll.u32 [#allocation7], 4
      %s38 = int_to_ptr.vmem [resolvable:$true] %s37
      %43 = dma.hbm_to_vmem [thread:$0]  %s3, 8192, %s38, [#allocation8], 512, 512, 32
    $region17: #{tpu_custom_call.1} parent=1 // pred_fallthru
      _
    // Predicated region
    $region18: #{tpu_custom_call.1} parent=1 // pred_check
      _
    $region19: #{tpu_custom_call.1} parent=1 // pred_check_branch
      %45 = sbr.rel (0) target = $region21
    $region20: #{tpu_custom_call.1} parent=1 // pred_region
      %s47 = ssub.s32 2048, 2048
      %48 = vsyncadd [#allocation8], %s47
      %s49 = sshll.u32 [#allocation9], 4
      %s50 = int_to_ptr.vmem [resolvable:$true] %s49
      %55 = dma.hbm_to_vmem [thread:$0]  %s4, 2048, %s50, [#allocation8], 128, 128, 8
    $region21: #{tpu_custom_call.1} parent=1 // pred_fallthru
      _
    // Predicated region
    $region22: #{tpu_custom_call.1} parent=1 // pred_check
      _
    $region23: #{tpu_custom_call.1} parent=1 // pred_check_branch
      %57 = sbr.rel (0) target = $region25
    $region24: #{tpu_custom_call.1} parent=1 // pred_region
      %s59 = ssub.s32 2048, 2048
      %60 = vsyncadd [#allocation11], %s59
      %s61 = sshll.u32 [#allocation10], 4
      %s62 = int_to_ptr.vmem [resolvable:$true] %s61
      %67 = dma.hbm_to_vmem [thread:$0]  %s5, 2048, %s62, [#allocation11], 128, 128, 8
    $region25: #{tpu_custom_call.1} parent=1 // pred_fallthru
      _
    // Predicated region
    $region26: #{tpu_custom_call.1} parent=1 // pred_check
      _
    $region27: #{tpu_custom_call.1} parent=1 // pred_check_branch
      %69 = sbr.rel (0) target = $region29
    $region28: #{tpu_custom_call.1} parent=1 // pred_region
      _
    $region29: #{tpu_custom_call.1} parent=1 // pred_fallthru
      _
    // Predicated region
    $region30: #{tpu_custom_call.1} parent=1 // pred_check
      _
    $region31: #{tpu_custom_call.1} parent=1 // pred_check_branch
      %71 = sbr.rel (0) target = $region33
    $region32: #{tpu_custom_call.1} parent=1 // pred_region
      %72 = dma.done [#allocation5], 2048
    $region33: #{tpu_custom_call.1} parent=1 // pred_fallthru
      _
    // Predicated region
    $region34: #{tpu_custom_call.1} parent=1 // pred_check
      _
    $region35: #{tpu_custom_call.1} parent=1 // pred_check_branch
      %74 = sbr.rel (0) target = $region37
    $region36: #{tpu_custom_call.1} parent=1 // pred_region
      %75 = dma.done [#allocation8], 8192
    $region37: #{tpu_custom_call.1} parent=1 // pred_fallthru
      _
    // Predicated region
    $region38: #{tpu_custom_call.1} parent=1 // pred_check
      _
    $region39: #{tpu_custom_call.1} parent=1 // pred_check_branch
      %77 = sbr.rel (0) target = $region41
    $region40: #{tpu_custom_call.1} parent=1 // pred_region
      %78 = dma.done [#allocation8], 2048
    $region41: #{tpu_custom_call.1} parent=1 // pred_fallthru
      _
    // Predicated region
    $region42: #{tpu_custom_call.1} parent=1 // pred_check
      _
    $region43: #{tpu_custom_call.1} parent=1 // pred_check_branch
      %80 = sbr.rel (0) target = $region45
    $region44: #{tpu_custom_call.1} parent=1 // pred_region
      %81 = dma.done [#allocation11], 2048
    $region45: #{tpu_custom_call.1} parent=1 // pred_fallthru
      _
    %v82 = vld [vmem:[%s0] sm:$0xff]
    %v83 = vld [vmem:[%s0 + $0x8] sm:$0xff]
    %v84 = vld [vmem:[%s0 + $0x10] sm:$0xff]
    %v85 = vld [vmem:[%s0 + $0x18] sm:$0xff]
    %v86 = vld [vmem:[%s0 + $0x20] sm:$0xff]
    %v87 = vld [vmem:[%s0 + $0x28] sm:$0xff]
    %v88 = vld [vmem:[%s0 + $0x30] sm:$0xff]
    %v89 = vld [vmem:[%s0 + $0x38] sm:$0xff]
    %v90 = vld [vmem:[#allocation4] sm:$0xff]
    %v91 = vld [vmem:[#allocation4 + $0x8] sm:$0xff]
    %v92 = vld [vmem:[#allocation4 + $0x10] sm:$0xff]
    %v93 = vld [vmem:[#allocation4 + $0x18] sm:$0xff]
    %v94 = vld [vmem:[#allocation4 + $0x20] sm:$0xff]
    %v95 = vld [vmem:[#allocation4 + $0x28] sm:$0xff]
    %v96 = vld [vmem:[#allocation4 + $0x30] sm:$0xff]
    %v97 = vld [vmem:[#allocation4 + $0x38] sm:$0xff]
    %v98 = vld [vmem:[#allocation4 + $0x40] sm:$0xff]
    %v99 = vld [vmem:[#allocation4 + $0x48] sm:$0xff]
    %v100 = vld [vmem:[#allocation4 + $0x50] sm:$0xff]
    %v101 = vld [vmem:[#allocation4 + $0x58] sm:$0xff]
    %v102 = vld [vmem:[#allocation4 + $0x60] sm:$0xff]
    %v103 = vld [vmem:[#allocation4 + $0x68] sm:$0xff]
    %v104 = vld [vmem:[#allocation4 + $0x70] sm:$0xff]
    %v105 = vld [vmem:[#allocation4 + $0x78] sm:$0xff]
    %v106 = vld [vmem:[%s2] sm:$0xf]
    %v108 = vlaneseq
    %v109 = vshrl.u32 %v108, 7
    %v110 = vsub.s32 0, %v109
    %v111 = vrot.slane %v106, %v110
    %v112 = vlaneseq
    %v113 = vshrl.u32 %v112, 7
    %v114 = vsub.s32 1, %v113
    %v115 = vrot.slane %v106, %v114
    %v116 = vlaneseq
    %v117 = vshrl.u32 %v116, 7
    %v118 = vsub.s32 2, %v117
    %v119 = vrot.slane %v106, %v118
    %v120 = vlaneseq
    %v121 = vshrl.u32 %v120, 7
    %v122 = vsub.s32 3, %v121
    %v123 = vrot.slane %v106, %v122
    %vm128 = vcmask 261120
    %v130 = vsel %vm128, %v82, 0
    %v133 = vsel %vm128, %v83, 0
    %v136 = vsel %vm128, %v84, 0
    %v139 = vsel %vm128, %v85, 0
    %v142 = vsel %vm128, %v86, 0
    %v145 = vsel %vm128, %v87, 0
    %v148 = vsel %vm128, %v88, 0
    %v151 = vsel %vm128, %v89, 0
    %153 = vmatprep.subr.mxu0 %v91
    %154 = vmatpush1.msra.mxu0 %v90
    %155 = vmatprep.subr.mxu0 %v95
    %156 = vmatpush1.msra.mxu0 %v94
    %157 = vmatprep.subr.mxu0 %v99
    %158 = vmatpush1.msra.mxu0 %v98
    %159 = vmatprep.subr.mxu0 %v103
    %160 = vmatpush1.msra.mxu0 %v102
    %161 = vmatprep.subr.mxu0 0.0
    %162 = vmatpush1.msra.mxu0 0.0
    %163 = vmatprep.subr.mxu0 0.0
    %164 = vmatpush1.msra.mxu0 0.0
    %165 = vmatprep.subr.mxu0 0.0
    %166 = vmatpush1.msra.mxu0 0.0
    %167 = vmatprep.subr.mxu0 0.0
    %168 = vmatpush1.msra.mxu0 0.0
    %169 = vmatprep.subr.mxu0 0.0
    %170 = vmatpush1.msra.mxu0 0.0
    %171 = vmatprep.subr.mxu0 0.0
    %172 = vmatpush1.msra.mxu0 0.0
    %173 = vmatprep.subr.mxu0 0.0
    %174 = vmatpush1.msra.mxu0 0.0
    %175 = vmatprep.subr.mxu0 0.0
    %176 = vmatpush1.msra.mxu0 0.0
    %177 = vmatprep.subr.mxu0 0.0
    %178 = vmatpush1.msra.mxu0 0.0
    %179 = vmatprep.subr.mxu0 0.0
    %180 = vmatpush1.msra.mxu0 0.0
    %181 = vmatprep.subr.mxu0 0.0
    %182 = vmatpush1.msra.mxu0 0.0
    %183 = vmatprep.subr.mxu0 0.0
    %184 = vmatpush1.msra.mxu0 0.0
    %185 = vmatprep.subr.mxu0 0.0
    %186 = vmatpush1.msra.mxu0 0.0
    %187 = vmatprep.subr.mxu0 0.0
    %188 = vmatpush1.msra.mxu0 0.0
    %189 = vmatprep.subr.mxu0 0.0
    %190 = vmatpush1.msra.mxu0 0.0
    %191 = vmatprep.subr.mxu0 0.0
    %192 = vmatpush1.msra.mxu0 0.0
    %193 = vmatprep.subr.mxu0 0.0
    %194 = vmatpush1.msra.mxu0 0.0
    %195 = vmatprep.subr.mxu0 0.0
    %196 = vmatpush1.msra.mxu0 0.0
    %197 = vmatprep.subr.mxu0 0.0
    %198 = vmatpush1.msra.mxu0 0.0
    %199 = vmatprep.subr.mxu0 0.0
    %200 = vmatpush1.msra.mxu0 0.0
    %201 = vmatprep.subr.mxu0 0.0
    %202 = vmatpush1.msra.mxu0 0.0
    %203 = vmatprep.subr.mxu0 0.0
    %204 = vmatpush1.msra.mxu0 0.0
    %205 = vmatprep.subr.mxu0 0.0
    %206 = vmatpush1.msra.mxu0 0.0
    %207 = vmatprep.subr.mxu0 0.0
    %208 = vmatpush1.msra.mxu0 0.0
    %209 = vmatprep.subr.mxu0 0.0
    %210 = vmatpush1.msra.mxu0 0.0
    %211 = vmatprep.subr.mxu0 0.0
    %212 = vmatpush1.msra.mxu0 0.0
    %213 = vmatprep.subr.mxu0 0.0
    %214 = vmatpush1.msra.mxu0 0.0
    %215 = vmatprep.subr.mxu0 0.0
    %216 = vmatpush1.msra.mxu0 0.0
    %217 = vmatprep.mubr.f32.mxu0 0.0
    %218 = vmatmul.mubr.f32.gmra.mrb[0].mxu0 %v130
    %v219 = vpop.f32.mrb[0].mxu0
    %v220 = vadd.f32 %v111, %v219
    %v221 = vpop.f32.mrb[0].mxu0
    %v222 = vadd.f32 %v115, %v221
    %223 = vmatprep.mubr.f32.mxu0 0.0
    %224 = vmatmul.mubr.f32.gmra.mrb[0].mxu0 %v133
    %v225 = vpop.f32.mrb[0].mxu0
    %v226 = vadd.f32 %v111, %v225
    %v227 = vpop.f32.mrb[0].mxu0
    %v228 = vadd.f32 %v115, %v227
    %229 = vmatprep.mubr.f32.mxu0 0.0
    %230 = vmatmul.mubr.f32.gmra.mrb[0].mxu0 %v136
    %v231 = vpop.f32.mrb[0].mxu0
    %v232 = vadd.f32 %v111, %v231
    %v233 = vpop.f32.mrb[0].mxu0
    %v234 = vadd.f32 %v115, %v233
    %235 = vmatprep.mubr.f32.mxu0 0.0
    %236 = vmatmul.mubr.f32.gmra.mrb[0].mxu0 %v139
    %v237 = vpop.f32.mrb[0].mxu0
    %v238 = vadd.f32 %v111, %v237
    %v239 = vpop.f32.mrb[0].mxu0
    %v240 = vadd.f32 %v115, %v239
    %241 = vmatprep.mubr.f32.mxu0 0.0
    %242 = vmatmul.mubr.f32.gmra.mrb[0].mxu0 %v142
    %v243 = vpop.f32.mrb[0].mxu0
    %v244 = vadd.f32 %v111, %v243
    %v245 = vpop.f32.mrb[0].mxu0
    %v246 = vadd.f32 %v115, %v245
    %247 = vmatprep.mubr.f32.mxu0 0.0
    %248 = vmatmul.mubr.f32.gmra.mrb[0].mxu0 %v145
    %v249 = vpop.f32.mrb[0].mxu0
    %v250 = vadd.f32 %v111, %v249
    %v251 = vpop.f32.mrb[0].mxu0
    %v252 = vadd.f32 %v115, %v251
    %253 = vmatprep.mubr.f32.mxu0 0.0
    %254 = vmatmul.mubr.f32.gmra.mrb[0].mxu0 %v148
    %v255 = vpop.f32.mrb[0].mxu0
    %v256 = vadd.f32 %v111, %v255
    %v257 = vpop.f32.mrb[0].mxu0
    %v258 = vadd.f32 %v115, %v257
    %259 = vmatprep.mubr.f32.mxu0 0.0
    %260 = vmatmul.mubr.f32.gmra.mrb[0].mxu0 %v151
    %v261 = vpop.f32.mrb[0].mxu0
    %v262 = vadd.f32 %v111, %v261
    %v263 = vpop.f32.mrb[0].mxu0
    %v264 = vadd.f32 %v115, %v263
    %265 = vdwg.mxu0
    %266 = vmatprep.subr.mxu0 %v93
    %267 = vmatpush1.msra.mxu0 %v92
    %268 = vmatprep.subr.mxu0 %v97
    %269 = vmatpush1.msra.mxu0 %v96
    %270 = vmatprep.subr.mxu0 %v101
    %271 = vmatpush1.msra.mxu0 %v100
    %272 = vmatprep.subr.mxu0 %v105
    %273 = vmatpush1.msra.mxu0 %v104
    %274 = vmatprep.subr.mxu0 0.0
    %275 = vmatpush1.msra.mxu0 0.0
    %276 = vmatprep.subr.mxu0 0.0
    %277 = vmatpush1.msra.mxu0 0.0
    %278 = vmatprep.subr.mxu0 0.0
    %279 = vmatpush1.msra.mxu0 0.0
    %280 = vmatprep.subr.mxu0 0.0
    %281 = vmatpush1.msra.mxu0 0.0
    %282 = vmatprep.subr.mxu0 0.0
    %283 = vmatpush1.msra.mxu0 0.0
    %284 = vmatprep.subr.mxu0 0.0
    %285 = vmatpush1.msra.mxu0 0.0
    %286 = vmatprep.subr.mxu0 0.0
    %287 = vmatpush1.msra.mxu0 0.0
    %288 = vmatprep.subr.mxu0 0.0
    %289 = vmatpush1.msra.mxu0 0.0
    %290 = vmatprep.subr.mxu0 0.0
    %291 = vmatpush1.msra.mxu0 0.0
    %292 = vmatprep.subr.mxu0 0.0
    %293 = vmatpush1.msra.mxu0 0.0
    %294 = vmatprep.subr.mxu0 0.0
    %295 = vmatpush1.msra.mxu0 0.0
    %296 = vmatprep.subr.mxu0 0.0
    %297 = vmatpush1.msra.mxu0 0.0
    %298 = vmatprep.subr.mxu0 0.0
    %299 = vmatpush1.msra.mxu0 0.0
    %300 = vmatprep.subr.mxu0 0.0
    %301 = vmatpush1.msra.mxu0 0.0
    %302 = vmatprep.subr.mxu0 0.0
    %303 = vmatpush1.msra.mxu0 0.0
    %304 = vmatprep.subr.mxu0 0.0
    %305 = vmatpush1.msra.mxu0 0.0
    %306 = vmatprep.subr.mxu0 0.0
    %307 = vmatpush1.msra.mxu0 0.0
    %308 = vmatprep.subr.mxu0 0.0
    %309 = vmatpush1.msra.mxu0 0.0
    %310 = vmatprep.subr.mxu0 0.0
    %311 = vmatpush1.msra.mxu0 0.0
    %312 = vmatprep.subr.mxu0 0.0
    %313 = vmatpush1.msra.mxu0 0.0
    %314 = vmatprep.subr.mxu0 0.0
    %315 = vmatpush1.msra.mxu0 0.0
    %316 = vmatprep.subr.mxu0 0.0
    %317 = vmatpush1.msra.mxu0 0.0
    %318 = vmatprep.subr.mxu0 0.0
    %319 = vmatpush1.msra.mxu0 0.0
    %320 = vmatprep.subr.mxu0 0.0
    %321 = vmatpush1.msra.mxu0 0.0
    %322 = vmatprep.subr.mxu0 0.0
    %323 = vmatpush1.msra.mxu0 0.0
    %324 = vmatprep.subr.mxu0 0.0
    %325 = vmatpush1.msra.mxu0 0.0
    %326 = vmatprep.subr.mxu0 0.0
    %327 = vmatpush1.msra.mxu0 0.0
    %328 = vmatprep.subr.mxu0 0.0
    %329 = vmatpush1.msra.mxu0 0.0
    %330 = vmatprep.mubr.f32.mxu0 0.0
    %331 = vmatmul.mubr.f32.gmra.mrb[0].mxu0 %v130
    %v332 = vpop.f32.mrb[0].mxu0
    %v333 = vadd.f32 %v119, %v332
    %v334 = vpop.f32.mrb[0].mxu0
    %v335 = vadd.f32 %v123, %v334
    %336 = vmatprep.mubr.f32.mxu0 0.0
    %337 = vmatmul.mubr.f32.gmra.mrb[0].mxu0 %v133
    %v338 = vpop.f32.mrb[0].mxu0
    %v339 = vadd.f32 %v119, %v338
    %v340 = vpop.f32.mrb[0].mxu0
    %v341 = vadd.f32 %v123, %v340
    %342 = vmatprep.mubr.f32.mxu0 0.0
    %343 = vmatmul.mubr.f32.gmra.mrb[0].mxu0 %v136
    %v344 = vpop.f32.mrb[0].mxu0
    %v345 = vadd.f32 %v119, %v344
    %v346 = vpop.f32.mrb[0].mxu0
    %v347 = vadd.f32 %v123, %v346
    %348 = vmatprep.mubr.f32.mxu0 0.0
    %349 = vmatmul.mubr.f32.gmra.mrb[0].mxu0 %v139
    %v350 = vpop.f32.mrb[0].mxu0
    %v351 = vadd.f32 %v119, %v350
    %v352 = vpop.f32.mrb[0].mxu0
    %v353 = vadd.f32 %v123, %v352
    %354 = vmatprep.mubr.f32.mxu0 0.0
    %355 = vmatmul.mubr.f32.gmra.mrb[0].mxu0 %v142
    %v356 = vpop.f32.mrb[0].mxu0
    %v357 = vadd.f32 %v119, %v356
    %v358 = vpop.f32.mrb[0].mxu0
    %v359 = vadd.f32 %v123, %v358
    %360 = vmatprep.mubr.f32.mxu0 0.0
    %361 = vmatmul.mubr.f32.gmra.mrb[0].mxu0 %v145
    %v362 = vpop.f32.mrb[0].mxu0
    %v363 = vadd.f32 %v119, %v362
    %v364 = vpop.f32.mrb[0].mxu0
    %v365 = vadd.f32 %v123, %v364
    %366 = vmatprep.mubr.f32.mxu0 0.0
    %367 = vmatmul.mubr.f32.gmra.mrb[0].mxu0 %v148
    %v368 = vpop.f32.mrb[0].mxu0
    %v369 = vadd.f32 %v119, %v368
    %v370 = vpop.f32.mrb[0].mxu0
    %v371 = vadd.f32 %v123, %v370
    %372 = vmatprep.mubr.f32.mxu0 0.0
    %373 = vmatmul.mubr.f32.gmra.mrb[0].mxu0 %v151
    %v374 = vpop.f32.mrb[0].mxu0
    %v375 = vadd.f32 %v119, %v374
    %v376 = vpop.f32.mrb[0].mxu0
    %v377 = vadd.f32 %v123, %v376
    %378 = vdwg.mxu0
    %v379 = vld [vmem:[#allocation7] sm:$0xff]
    %v380 = vld [vmem:[#allocation7 + $0x8] sm:$0xff]
    %v381 = vld [vmem:[#allocation7 + $0x10] sm:$0xff]
    %v382 = vld [vmem:[#allocation7 + $0x18] sm:$0xff]
    %v383 = vld [vmem:[#allocation7 + $0x20] sm:$0xff]
    %v384 = vld [vmem:[#allocation7 + $0x28] sm:$0xff]
    %v385 = vld [vmem:[#allocation7 + $0x30] sm:$0xff]
    %v386 = vld [vmem:[#allocation7 + $0x38] sm:$0xff]
    %v387 = vld [vmem:[#allocation7 + $0x40] sm:$0xff]
    %v388 = vld [vmem:[#allocation7 + $0x48] sm:$0xff]
    %v389 = vld [vmem:[#allocation7 + $0x50] sm:$0xff]
    %v390 = vld [vmem:[#allocation7 + $0x58] sm:$0xff]
    %v391 = vld [vmem:[#allocation7 + $0x60] sm:$0xff]
    %v392 = vld [vmem:[#allocation7 + $0x68] sm:$0xff]
    %v393 = vld [vmem:[#allocation7 + $0x70] sm:$0xff]
    %v394 = vld [vmem:[#allocation7 + $0x78] sm:$0xff]
    %v395 = vld [vmem:[#allocation7 + $0x80] sm:$0xff]
    %v396 = vld [vmem:[#allocation7 + $0x88] sm:$0xff]
    %v397 = vld [vmem:[#allocation7 + $0x90] sm:$0xff]
    %v398 = vld [vmem:[#allocation7 + $0x98] sm:$0xff]
    %v399 = vld [vmem:[#allocation7 + $0xa0] sm:$0xff]
    %v400 = vld [vmem:[#allocation7 + $0xa8] sm:$0xff]
    %v401 = vld [vmem:[#allocation7 + $0xb0] sm:$0xff]
    %v402 = vld [vmem:[#allocation7 + $0xb8] sm:$0xff]
    %v403 = vld [vmem:[#allocation7 + $0xc0] sm:$0xff]
    %v404 = vld [vmem:[#allocation7 + $0xc8] sm:$0xff]
    %v405 = vld [vmem:[#allocation7 + $0xd0] sm:$0xff]
    %v406 = vld [vmem:[#allocation7 + $0xd8] sm:$0xff]
    %v407 = vld [vmem:[#allocation7 + $0xe0] sm:$0xff]
    %v408 = vld [vmem:[#allocation7 + $0xe8] sm:$0xff]
    %v409 = vld [vmem:[#allocation7 + $0xf0] sm:$0xff]
    %v410 = vld [vmem:[#allocation7 + $0xf8] sm:$0xff]
    %v411 = vld [vmem:[#allocation7 + $0x100] sm:$0xff]
    %v412 = vld [vmem:[#allocation7 + $0x108] sm:$0xff]
    %v413 = vld [vmem:[#allocation7 + $0x110] sm:$0xff]
    %v414 = vld [vmem:[#allocation7 + $0x118] sm:$0xff]
    %v415 = vld [vmem:[#allocation7 + $0x120] sm:$0xff]
    %v416 = vld [vmem:[#allocation7 + $0x128] sm:$0xff]
    %v417 = vld [vmem:[#allocation7 + $0x130] sm:$0xff]
    %v418 = vld [vmem:[#allocation7 + $0x138] sm:$0xff]
    %v419 = vld [vmem:[#allocation7 + $0x140] sm:$0xff]
    %v420 = vld [vmem:[#allocation7 + $0x148] sm:$0xff]
    %v421 = vld [vmem:[#allocation7 + $0x150] sm:$0xff]
    %v422 = vld [vmem:[#allocation7 + $0x158] sm:$0xff]
    %v423 = vld [vmem:[#allocation7 + $0x160] sm:$0xff]
    %v424 = vld [vmem:[#allocation7 + $0x168] sm:$0xff]
    %v425 = vld [vmem:[#allocation7 + $0x170] sm:$0xff]
    %v426 = vld [vmem:[#allocation7 + $0x178] sm:$0xff]
    %v427 = vld [vmem:[#allocation7 + $0x180] sm:$0xff]
    %v428 = vld [vmem:[#allocation7 + $0x188] sm:$0xff]
    %v429 = vld [vmem:[#allocation7 + $0x190] sm:$0xff]
    %v430 = vld [vmem:[#allocation7 + $0x198] sm:$0xff]
    %v431 = vld [vmem:[#allocation7 + $0x1a0] sm:$0xff]
    %v432 = vld [vmem:[#allocation7 + $0x1a8] sm:$0xff]
    %v433 = vld [vmem:[#allocation7 + $0x1b0] sm:$0xff]
    %v434 = vld [vmem:[#allocation7 + $0x1b8] sm:$0xff]
    %v435 = vld [vmem:[#allocation7 + $0x1c0] sm:$0xff]
    %v436 = vld [vmem:[#allocation7 + $0x1c8] sm:$0xff]
    %v437 = vld [vmem:[#allocation7 + $0x1d0] sm:$0xff]
    %v438 = vld [vmem:[#allocation7 + $0x1d8] sm:$0xff]
    %v439 = vld [vmem:[#allocation7 + $0x1e0] sm:$0xff]
    %v440 = vld [vmem:[#allocation7 + $0x1e8] sm:$0xff]
    %v441 = vld [vmem:[#allocation7 + $0x1f0] sm:$0xff]
    %v442 = vld [vmem:[#allocation7 + $0x1f8] sm:$0xff]
    %443 = vmatprep.subr.mxu0 %v380
    %444 = vmatpush1.msra.mxu0 %v379
    %445 = vmatprep.subr.mxu0 %v384
    %446 = vmatpush1.msra.mxu0 %v383
    %447 = vmatprep.subr.mxu0 %v388
    %448 = vmatpush1.msra.mxu0 %v387
    %449 = vmatprep.subr.mxu0 %v392
    %450 = vmatpush1.msra.mxu0 %v391
    %451 = vmatprep.subr.mxu0 %v396
    %452 = vmatpush1.msra.mxu0 %v395
    %453 = vmatprep.subr.mxu0 %v400
    %454 = vmatpush1.msra.mxu0 %v399
    %455 = vmatprep.subr.mxu0 %v404
    %456 = vmatpush1.msra.mxu0 %v403
    %457 = vmatprep.subr.mxu0 %v408
    %458 = vmatpush1.msra.mxu0 %v407
    %459 = vmatprep.subr.mxu0 %v412
    %460 = vmatpush1.msra.mxu0 %v411
    %461 = vmatprep.subr.mxu0 %v416
    %462 = vmatpush1.msra.mxu0 %v415
    %463 = vmatprep.subr.mxu0 %v420
    %464 = vmatpush1.msra.mxu0 %v419
    %465 = vmatprep.subr.mxu0 %v424
    %466 = vmatpush1.msra.mxu0 %v423
    %467 = vmatprep.subr.mxu0 %v428
    %468 = vmatpush1.msra.mxu0 %v427
    %469 = vmatprep.subr.mxu0 %v432
    %470 = vmatpush1.msra.mxu0 %v431
    %471 = vmatprep.subr.mxu0 %v436
    %472 = vmatpush1.msra.mxu0 %v435
    %473 = vmatprep.subr.mxu0 %v440
    %474 = vmatpush1.msra.mxu0 %v439
    %475 = vmatprep.subr.mxu0 0.0
    %476 = vmatpush1.msra.mxu0 0.0
    %477 = vmatprep.subr.mxu0 0.0
    %478 = vmatpush1.msra.mxu0 0.0
    %479 = vmatprep.subr.mxu0 0.0
    %480 = vmatpush1.msra.mxu0 0.0
    %481 = vmatprep.subr.mxu0 0.0
    %482 = vmatpush1.msra.mxu0 0.0
    %483 = vmatprep.subr.mxu0 0.0
    %484 = vmatpush1.msra.mxu0 0.0
    %485 = vmatprep.subr.mxu0 0.0
    %486 = vmatpush1.msra.mxu0 0.0
    %487 = vmatprep.subr.mxu0 0.0
    %488 = vmatpush1.msra.mxu0 0.0
    %489 = vmatprep.subr.mxu0 0.0
    %490 = vmatpush1.msra.mxu0 0.0
    %491 = vmatprep.subr.mxu0 0.0
    %492 = vmatpush1.msra.mxu0 0.0
    %493 = vmatprep.subr.mxu0 0.0
    %494 = vmatpush1.msra.mxu0 0.0
    %495 = vmatprep.subr.mxu0 0.0
    %496 = vmatpush1.msra.mxu0 0.0
    %497 = vmatprep.subr.mxu0 0.0
    %498 = vmatpush1.msra.mxu0 0.0
    %499 = vmatprep.subr.mxu0 0.0
    %500 = vmatpush1.msra.mxu0 0.0
    %501 = vmatprep.subr.mxu0 0.0
    %502 = vmatpush1.msra.mxu0 0.0
    %503 = vmatprep.subr.mxu0 0.0
    %504 = vmatpush1.msra.mxu0 0.0
    %505 = vmatprep.subr.mxu0 0.0
    %506 = vmatpush1.msra.mxu0 0.0
    %507 = vmatprep.mubr.f32.mxu0 0.0
    %508 = vmatmul.mubr.f32.gmra.mrb[0].mxu0 0.0
    %v509 = vpop.f32.mrb[0].mxu0
    %v510 = vadd.f32 0.0, %v509
    %v511 = vpop.f32.mrb[0].mxu0
    %v512 = vadd.f32 0.0, %v511
    %513 = vdwg.mxu0
    %514 = vmatprep.subr.mxu0 %v382
    %515 = vmatpush1.msra.mxu0 %v381
    %516 = vmatprep.subr.mxu0 %v386
    %517 = vmatpush1.msra.mxu0 %v385
    %518 = vmatprep.subr.mxu0 %v390
    %519 = vmatpush1.msra.mxu0 %v389
    %520 = vmatprep.subr.mxu0 %v394
    %521 = vmatpush1.msra.mxu0 %v393
    %522 = vmatprep.subr.mxu0 %v398
    %523 = vmatpush1.msra.mxu0 %v397
    %524 = vmatprep.subr.mxu0 %v402
    %525 = vmatpush1.msra.mxu0 %v401
    %526 = vmatprep.subr.mxu0 %v406
    %527 = vmatpush1.msra.mxu0 %v405
    %528 = vmatprep.subr.mxu0 %v410
    %529 = vmatpush1.msra.mxu0 %v409
    %530 = vmatprep.subr.mxu0 %v414
    %531 = vmatpush1.msra.mxu0 %v413
    %532 = vmatprep.subr.mxu0 %v418
    %533 = vmatpush1.msra.mxu0 %v417
    %534 = vmatprep.subr.mxu0 %v422
    %535 = vmatpush1.msra.mxu0 %v421
    %536 = vmatprep.subr.mxu0 %v426
    %537 = vmatpush1.msra.mxu0 %v425
    %538 = vmatprep.subr.mxu0 %v430
    %539 = vmatpush1.msra.mxu0 %v429
    %540 = vmatprep.subr.mxu0 %v434
    %541 = vmatpush1.msra.mxu0 %v433
    %542 = vmatprep.subr.mxu0 %v438
    %543 = vmatpush1.msra.mxu0 %v437
    %544 = vmatprep.subr.mxu0 %v442
    %545 = vmatpush1.msra.mxu0 %v441
    %546 = vmatprep.subr.mxu0 0.0
    %547 = vmatpush1.msra.mxu0 0.0
    %548 = vmatprep.subr.mxu0 0.0
    %549 = vmatpush1.msra.mxu0 0.0
    %550 = vmatprep.subr.mxu0 0.0
    %551 = vmatpush1.msra.mxu0 0.0
    %552 = vmatprep.subr.mxu0 0.0
    %553 = vmatpush1.msra.mxu0 0.0
    %554 = vmatprep.subr.mxu0 0.0
    %555 = vmatpush1.msra.mxu0 0.0
    %556 = vmatprep.subr.mxu0 0.0
    %557 = vmatpush1.msra.mxu0 0.0
    %558 = vmatprep.subr.mxu0 0.0
    %559 = vmatpush1.msra.mxu0 0.0
    %560 = vmatprep.subr.mxu0 0.0
    %561 = vmatpush1.msra.mxu0 0.0
    %562 = vmatprep.subr.mxu0 0.0
    %563 = vmatpush1.msra.mxu0 0.0
    %564 = vmatprep.subr.mxu0 0.0
    %565 = vmatpush1.msra.mxu0 0.0
    %566 = vmatprep.subr.mxu0 0.0
    %567 = vmatpush1.msra.mxu0 0.0
    %568 = vmatprep.subr.mxu0 0.0
    %569 = vmatpush1.msra.mxu0 0.0
    %570 = vmatprep.subr.mxu0 0.0
    %571 = vmatpush1.msra.mxu0 0.0
    %572 = vmatprep.subr.mxu0 0.0
    %573 = vmatpush1.msra.mxu0 0.0
    %574 = vmatprep.subr.mxu0 0.0
    %575 = vmatpush1.msra.mxu0 0.0
    %576 = vmatprep.subr.mxu0 0.0
    %577 = vmatpush1.msra.mxu0 0.0
    %578 = vmatprep.mubr.f32.mxu0 0.0
    %579 = vmatmul.mubr.f32.gmra.mrb[0].mxu0 0.0
    %v580 = vpop.f32.mrb[0].mxu0
    %v581 = vadd.f32 0.0, %v580
    %v582 = vpop.f32.mrb[0].mxu0
    %v583 = vadd.f32 0.0, %v582
    %584 = vdwg.mxu0
    %v585 = vadd.f32 %v220, %v510
    %v586 = vadd.f32 %v222, %v512
    %v587 = vadd.f32 %v333, %v581
    %v588 = vadd.f32 %v335, %v583
    %v589 = vxor.u32 %v585, 2147483648
    %v590 = vxor.u32 %v586, 2147483648
    %v591 = vxor.u32 %v587, 2147483648
    %v592 = vmul.f32 %v589, 1.442695
    %v593 = vpow.pop %v592
    %v594 = vmul.f32 %v590, 1.442695
    %v595 = vpow.pop %v594
    %v596 = vmul.f32 %v591, 1.442695
    %v597 = vpow.pop %v596
    %v598 = vadd.f32 %v593, 1.0
    %v599 = vadd.f32 %v595, 1.0
    %v600 = vadd.f32 %v597, 1.0
    %v601 = vrcp.pop %v598
    %v602 = vmul.f32 1.0, %v601
    %v603 = vrcp.pop %v599
    %v604 = vmul.f32 1.0, %v603
    %v605 = vrcp.pop %v600
    %v606 = vmul.f32 1.0, %v605
    %v607 = vtanh.pop %v588
    %v608 = vmul.f32 %v604, 0.0
    %v609 = vmul.f32 %v602, %v607
    %v610 = vadd.f32 %v608, %v609
    %v611 = vtanh.pop %v610
    %v612 = vmul.f32 %v606, %v611
    %613 = vst [vmem:[#allocation2] sm:$0xff] %v612
    %614 = vst [vmem:[#allocation3 + $0x38] sm:$0xff] %v612
    %615 = vmatprep.subr.mxu0 %v380
    %616 = vmatpush1.msra.mxu0 %v379
    %617 = vmatprep.subr.mxu0 %v384
    %618 = vmatpush1.msra.mxu0 %v383
    %619 = vmatprep.subr.mxu0 %v388
    %620 = vmatpush1.msra.mxu0 %v387
    %621 = vmatprep.subr.mxu0 %v392
    %622 = vmatpush1.msra.mxu0 %v391
    %623 = vmatprep.subr.mxu0 %v396
    %624 = vmatpush1.msra.mxu0 %v395
    %625 = vmatprep.subr.mxu0 %v400
    %626 = vmatpush1.msra.mxu0 %v399
    %627 = vmatprep.subr.mxu0 %v404
    %628 = vmatpush1.msra.mxu0 %v403
    %629 = vmatprep.subr.mxu0 %v408
    %630 = vmatpush1.msra.mxu0 %v407
    %631 = vmatprep.subr.mxu0 %v412
    %632 = vmatpush1.msra.mxu0 %v411
    %633 = vmatprep.subr.mxu0 %v416
    %634 = vmatpush1.msra.mxu0 %v415
    %635 = vmatprep.subr.mxu0 %v420
    %636 = vmatpush1.msra.mxu0 %v419
    %637 = vmatprep.subr.mxu0 %v424
    %638 = vmatpush1.msra.mxu0 %v423
    %639 = vmatprep.subr.mxu0 %v428
    %640 = vmatpush1.msra.mxu0 %v427
    %641 = vmatprep.subr.mxu0 %v432
    %642 = vmatpush1.msra.mxu0 %v431
    %643 = vmatprep.subr.mxu0 %v436
    %644 = vmatpush1.msra.mxu0 %v435
    %645 = vmatprep.subr.mxu0 %v440
    %646 = vmatpush1.msra.mxu0 %v439
    %647 = vmatprep.subr.mxu0 0.0
    %648 = vmatpush1.msra.mxu0 0.0
    %649 = vmatprep.subr.mxu0 0.0
    %650 = vmatpush1.msra.mxu0 0.0
    %651 = vmatprep.subr.mxu0 0.0
    %652 = vmatpush1.msra.mxu0 0.0
    %653 = vmatprep.subr.mxu0 0.0
    %654 = vmatpush1.msra.mxu0 0.0
    %655 = vmatprep.subr.mxu0 0.0
    %656 = vmatpush1.msra.mxu0 0.0
    %657 = vmatprep.subr.mxu0 0.0
    %658 = vmatpush1.msra.mxu0 0.0
    %659 = vmatprep.subr.mxu0 0.0
    %660 = vmatpush1.msra.mxu0 0.0
    %661 = vmatprep.subr.mxu0 0.0
    %662 = vmatpush1.msra.mxu0 0.0
    %663 = vmatprep.subr.mxu0 0.0
    %664 = vmatpush1.msra.mxu0 0.0
    %665 = vmatprep.subr.mxu0 0.0
    %666 = vmatpush1.msra.mxu0 0.0
    %667 = vmatprep.subr.mxu0 0.0
    %668 = vmatpush1.msra.mxu0 0.0
    %669 = vmatprep.subr.mxu0 0.0
    %670 = vmatpush1.msra.mxu0 0.0
    %671 = vmatprep.subr.mxu0 0.0
    %672 = vmatpush1.msra.mxu0 0.0
    %673 = vmatprep.subr.mxu0 0.0
    %674 = vmatpush1.msra.mxu0 0.0
    %675 = vmatprep.subr.mxu0 0.0
    %676 = vmatpush1.msra.mxu0 0.0
    %677 = vmatprep.subr.mxu0 0.0
    %678 = vmatpush1.msra.mxu0 0.0
    %679 = vmatprep.mubr.f32.mxu0 0.0
    %680 = vmatmul.mubr.f32.gmra.mrb[0].mxu0 %v612
    %v681 = vpop.f32.mrb[0].mxu0
    %v682 = vadd.f32 0.0, %v681
    %v683 = vpop.f32.mrb[0].mxu0
    %v684 = vadd.f32 0.0, %v683
    %685 = vdwg.mxu0
    %686 = vmatprep.subr.mxu0 %v382
    %687 = vmatpush1.msra.mxu0 %v381
    %688 = vmatprep.subr.mxu0 %v386
    %689 = vmatpush1.msra.mxu0 %v385
    %690 = vmatprep.subr.mxu0 %v390
    %691 = vmatpush1.msra.mxu0 %v389
    %692 = vmatprep.subr.mxu0 %v394
    %693 = vmatpush1.msra.mxu0 %v393
    %694 = vmatprep.subr.mxu0 %v398
    %695 = vmatpush1.msra.mxu0 %v397
    %696 = vmatprep.subr.mxu0 %v402
    %697 = vmatpush1.msra.mxu0 %v401
    %698 = vmatprep.subr.mxu0 %v406
    %699 = vmatpush1.msra.mxu0 %v405
    %700 = vmatprep.subr.mxu0 %v410
    %701 = vmatpush1.msra.mxu0 %v409
    %702 = vmatprep.subr.mxu0 %v414
    %703 = vmatpush1.msra.mxu0 %v413
    %704 = vmatprep.subr.mxu0 %v418
    %705 = vmatpush1.msra.mxu0 %v417
    %706 = vmatprep.subr.mxu0 %v422
    %707 = vmatpush1.msra.mxu0 %v421
    %708 = vmatprep.subr.mxu0 %v426
    %709 = vmatpush1.msra.mxu0 %v425
    %710 = vmatprep.subr.mxu0 %v430
    %711 = vmatpush1.msra.mxu0 %v429
    %712 = vmatprep.subr.mxu0 %v434
    %713 = vmatpush1.msra.mxu0 %v433
    %714 = vmatprep.subr.mxu0 %v438
    %715 = vmatpush1.msra.mxu0 %v437
    %716 = vmatprep.subr.mxu0 %v442
    %717 = vmatpush1.msra.mxu0 %v441
    %718 = vmatprep.subr.mxu0 0.0
    %719 = vmatpush1.msra.mxu0 0.0
    %720 = vmatprep.subr.mxu0 0.0
    %721 = vmatpush1.msra.mxu0 0.0
    %722 = vmatprep.subr.mxu0 0.0
    %723 = vmatpush1.msra.mxu0 0.0
    %724 = vmatprep.subr.mxu0 0.0
    %725 = vmatpush1.msra.mxu0 0.0
    %726 = vmatprep.subr.mxu0 0.0
    %727 = vmatpush1.msra.mxu0 0.0
    %728 = vmatprep.subr.mxu0 0.0
    %729 = vmatpush1.msra.mxu0 0.0
    %730 = vmatprep.subr.mxu0 0.0
    %731 = vmatpush1.msra.mxu0 0.0
    %732 = vmatprep.subr.mxu0 0.0
    %733 = vmatpush1.msra.mxu0 0.0
    %734 = vmatprep.subr.mxu0 0.0
    %735 = vmatpush1.msra.mxu0 0.0
    %736 = vmatprep.subr.mxu0 0.0
    %737 = vmatpush1.msra.mxu0 0.0
    %738 = vmatprep.subr.mxu0 0.0
    %739 = vmatpush1.msra.mxu0 0.0
    %740 = vmatprep.subr.mxu0 0.0
    %741 = vmatpush1.msra.mxu0 0.0
    %742 = vmatprep.subr.mxu0 0.0
    %743 = vmatpush1.msra.mxu0 0.0
    %744 = vmatprep.subr.mxu0 0.0
    %745 = vmatpush1.msra.mxu0 0.0
    %746 = vmatprep.subr.mxu0 0.0
    %747 = vmatpush1.msra.mxu0 0.0
    %748 = vmatprep.subr.mxu0 0.0
    %749 = vmatpush1.msra.mxu0 0.0
    %750 = vmatprep.mubr.f32.mxu0 0.0
    %751 = vmatmul.mubr.f32.gmra.mrb[0].mxu0 %v612
    %v752 = vpop.f32.mrb[0].mxu0
    %v753 = vadd.f32 0.0, %v752
    %v754 = vpop.f32.mrb[0].mxu0
    %v755 = vadd.f32 0.0, %v754
    %756 = vdwg.mxu0
    %v757 = vadd.f32 %v226, %v682
    %v758 = vadd.f32 %v228, %v684
    %v759 = vadd.f32 %v339, %v753
    %v760 = vadd.f32 %v341, %v755
    %v761 = vxor.u32 %v757, 2147483648
    %v762 = vxor.u32 %v758, 2147483648
    %v763 = vxor.u32 %v759, 2147483648
    %v764 = vmul.f32 %v761, 1.442695
    %v765 = vpow.pop %v764
    %v766 = vmul.f32 %v762, 1.442695
    %v767 = vpow.pop %v766
    %v768 = vmul.f32 %v763, 1.442695
    %v769 = vpow.pop %v768
    %v770 = vadd.f32 %v765, 1.0
    %v771 = vadd.f32 %v767, 1.0
    %v772 = vadd.f32 %v769, 1.0
    %v773 = vrcp.pop %v770
    %v774 = vmul.f32 1.0, %v773
    %v775 = vrcp.pop %v771
    %v776 = vmul.f32 1.0, %v775
    %v777 = vrcp.pop %v772
    %v778 = vmul.f32 1.0, %v777
    %v779 = vtanh.pop %v760
    %v780 = vmul.f32 %v776, %v610
    %v781 = vmul.f32 %v774, %v779
    %v782 = vadd.f32 %v780, %v781
    %v783 = vtanh.pop %v782
    %v784 = vmul.f32 %v778, %v783
    %785 = vst [vmem:[#allocation2 + $0x8] sm:$0xff] %v784
    %786 = vst [vmem:[#allocation3 + $0x30] sm:$0xff] %v784
    %787 = vmatprep.subr.mxu0 %v380
    %788 = vmatpush1.msra.mxu0 %v379
    %789 = vmatprep.subr.mxu0 %v384
    %790 = vmatpush1.msra.mxu0 %v383
    %791 = vmatprep.subr.mxu0 %v388
    %792 = vmatpush1.msra.mxu0 %v387
    %793 = vmatprep.subr.mxu0 %v392
    %794 = vmatpush1.msra.mxu0 %v391
    %795 = vmatprep.subr.mxu0 %v396
    %796 = vmatpush1.msra.mxu0 %v395
    %797 = vmatprep.subr.mxu0 %v400
    %798 = vmatpush1.msra.mxu0 %v399
    %799 = vmatprep.subr.mxu0 %v404
    %800 = vmatpush1.msra.mxu0 %v403
    %801 = vmatprep.subr.mxu0 %v408
    %802 = vmatpush1.msra.mxu0 %v407
    %803 = vmatprep.subr.mxu0 %v412
    %804 = vmatpush1.msra.mxu0 %v411
    %805 = vmatprep.subr.mxu0 %v416
    %806 = vmatpush1.msra.mxu0 %v415
    %807 = vmatprep.subr.mxu0 %v420
    %808 = vmatpush1.msra.mxu0 %v419
    %809 = vmatprep.subr.mxu0 %v424
    %810 = vmatpush1.msra.mxu0 %v423
    %811 = vmatprep.subr.mxu0 %v428
    %812 = vmatpush1.msra.mxu0 %v427
    %813 = vmatprep.subr.mxu0 %v432
    %814 = vmatpush1.msra.mxu0 %v431
    %815 = vmatprep.subr.mxu0 %v436
    %816 = vmatpush1.msra.mxu0 %v435
    %817 = vmatprep.subr.mxu0 %v440
    %818 = vmatpush1.msra.mxu0 %v439
    %819 = vmatprep.subr.mxu0 0.0
    %820 = vmatpush1.msra.mxu0 0.0
    %821 = vmatprep.subr.mxu0 0.0
    %822 = vmatpush1.msra.mxu0 0.0
    %823 = vmatprep.subr.mxu0 0.0
    %824 = vmatpush1.msra.mxu0 0.0
    %825 = vmatprep.subr.mxu0 0.0
    %826 = vmatpush1.msra.mxu0 0.0
    %827 = vmatprep.subr.mxu0 0.0
    %828 = vmatpush1.msra.mxu0 0.0
    %829 = vmatprep.subr.mxu0 0.0
    %830 = vmatpush1.msra.mxu0 0.0
    %831 = vmatprep.subr.mxu0 0.0
    %832 = vmatpush1.msra.mxu0 0.0
    %833 = vmatprep.subr.mxu0 0.0
    %834 = vmatpush1.msra.mxu0 0.0
    %835 = vmatprep.subr.mxu0 0.0
    %836 = vmatpush1.msra.mxu0 0.0
    %837 = vmatprep.subr.mxu0 0.0
    %838 = vmatpush1.msra.mxu0 0.0
    %839 = vmatprep.subr.mxu0 0.0
    %840 = vmatpush1.msra.mxu0 0.0
    %841 = vmatprep.subr.mxu0 0.0
    %842 = vmatpush1.msra.mxu0 0.0
    %843 = vmatprep.subr.mxu0 0.0
    %844 = vmatpush1.msra.mxu0 0.0
    %845 = vmatprep.subr.mxu0 0.0
    %846 = vmatpush1.msra.mxu0 0.0
    %847 = vmatprep.subr.mxu0 0.0
    %848 = vmatpush1.msra.mxu0 0.0
    %849 = vmatprep.subr.mxu0 0.0
    %850 = vmatpush1.msra.mxu0 0.0
    %851 = vmatprep.mubr.f32.mxu0 0.0
    %852 = vmatmul.mubr.f32.gmra.mrb[0].mxu0 %v784
    %v853 = vpop.f32.mrb[0].mxu0
    %v854 = vadd.f32 0.0, %v853
    %v855 = vpop.f32.mrb[0].mxu0
    %v856 = vadd.f32 0.0, %v855
    %857 = vdwg.mxu0
    %858 = vmatprep.subr.mxu0 %v382
    %859 = vmatpush1.msra.mxu0 %v381
    %860 = vmatprep.subr.mxu0 %v386
    %861 = vmatpush1.msra.mxu0 %v385
    %862 = vmatprep.subr.mxu0 %v390
    %863 = vmatpush1.msra.mxu0 %v389
    %864 = vmatprep.subr.mxu0 %v394
    %865 = vmatpush1.msra.mxu0 %v393
    %866 = vmatprep.subr.mxu0 %v398
    %867 = vmatpush1.msra.mxu0 %v397
    %868 = vmatprep.subr.mxu0 %v402
    %869 = vmatpush1.msra.mxu0 %v401
    %870 = vmatprep.subr.mxu0 %v406
    %871 = vmatpush1.msra.mxu0 %v405
    %872 = vmatprep.subr.mxu0 %v410
    %873 = vmatpush1.msra.mxu0 %v409
    %874 = vmatprep.subr.mxu0 %v414
    %875 = vmatpush1.msra.mxu0 %v413
    %876 = vmatprep.subr.mxu0 %v418
    %877 = vmatpush1.msra.mxu0 %v417
    %878 = vmatprep.subr.mxu0 %v422
    %879 = vmatpush1.msra.mxu0 %v421
    %880 = vmatprep.subr.mxu0 %v426
    %881 = vmatpush1.msra.mxu0 %v425
    %882 = vmatprep.subr.mxu0 %v430
    %883 = vmatpush1.msra.mxu0 %v429
    %884 = vmatprep.subr.mxu0 %v434
    %885 = vmatpush1.msra.mxu0 %v433
    %886 = vmatprep.subr.mxu0 %v438
    %887 = vmatpush1.msra.mxu0 %v437
    %888 = vmatprep.subr.mxu0 %v442
    %889 = vmatpush1.msra.mxu0 %v441
    %890 = vmatprep.subr.mxu0 0.0
    %891 = vmatpush1.msra.mxu0 0.0
    %892 = vmatprep.subr.mxu0 0.0
    %893 = vmatpush1.msra.mxu0 0.0
    %894 = vmatprep.subr.mxu0 0.0
    %895 = vmatpush1.msra.mxu0 0.0
    %896 = vmatprep.subr.mxu0 0.0
    %897 = vmatpush1.msra.mxu0 0.0
    %898 = vmatprep.subr.mxu0 0.0
    %899 = vmatpush1.msra.mxu0 0.0
    %900 = vmatprep.subr.mxu0 0.0
    %901 = vmatpush1.msra.mxu0 0.0
    %902 = vmatprep.subr.mxu0 0.0
    %903 = vmatpush1.msra.mxu0 0.0
    %904 = vmatprep.subr.mxu0 0.0
    %905 = vmatpush1.msra.mxu0 0.0
    %906 = vmatprep.subr.mxu0 0.0
    %907 = vmatpush1.msra.mxu0 0.0
    %908 = vmatprep.subr.mxu0 0.0
    %909 = vmatpush1.msra.mxu0 0.0
    %910 = vmatprep.subr.mxu0 0.0
    %911 = vmatpush1.msra.mxu0 0.0
    %912 = vmatprep.subr.mxu0 0.0
    %913 = vmatpush1.msra.mxu0 0.0
    %914 = vmatprep.subr.mxu0 0.0
    %915 = vmatpush1.msra.mxu0 0.0
    %916 = vmatprep.subr.mxu0 0.0
    %917 = vmatpush1.msra.mxu0 0.0
    %918 = vmatprep.subr.mxu0 0.0
    %919 = vmatpush1.msra.mxu0 0.0
    %920 = vmatprep.subr.mxu0 0.0
    %921 = vmatpush1.msra.mxu0 0.0
    %922 = vmatprep.mubr.f32.mxu0 0.0
    %923 = vmatmul.mubr.f32.gmra.mrb[0].mxu0 %v784
    %v924 = vpop.f32.mrb[0].mxu0
    %v925 = vadd.f32 0.0, %v924
    %v926 = vpop.f32.mrb[0].mxu0
    %v927 = vadd.f32 0.0, %v926
    %928 = vdwg.mxu0
    %v929 = vadd.f32 %v232, %v854
    %v930 = vadd.f32 %v234, %v856
    %v931 = vadd.f32 %v345, %v925
    %v932 = vadd.f32 %v347, %v927
    %v933 = vxor.u32 %v929, 2147483648
    %v934 = vxor.u32 %v930, 2147483648
    %v935 = vxor.u32 %v931, 2147483648
    %v936 = vmul.f32 %v933, 1.442695
    %v937 = vpow.pop %v936
    %v938 = vmul.f32 %v934, 1.442695
    %v939 = vpow.pop %v938
    %v940 = vmul.f32 %v935, 1.442695
    %v941 = vpow.pop %v940
    %v942 = vadd.f32 %v937, 1.0
    %v943 = vadd.f32 %v939, 1.0
    %v944 = vadd.f32 %v941, 1.0
    %v945 = vrcp.pop %v942
    %v946 = vmul.f32 1.0, %v945
    %v947 = vrcp.pop %v943
    %v948 = vmul.f32 1.0, %v947
    %v949 = vrcp.pop %v944
    %v950 = vmul.f32 1.0, %v949
    %v951 = vtanh.pop %v932
    %v952 = vmul.f32 %v948, %v782
    %v953 = vmul.f32 %v946, %v951
    %v954 = vadd.f32 %v952, %v953
    %v955 = vtanh.pop %v954
    %v956 = vmul.f32 %v950, %v955
    %957 = vst [vmem:[#allocation2 + $0x10] sm:$0xff] %v956
    %958 = vst [vmem:[#allocation3 + $0x28] sm:$0xff] %v956
    %959 = vmatprep.subr.mxu0 %v380
    %960 = vmatpush1.msra.mxu0 %v379
    %961 = vmatprep.subr.mxu0 %v384
    %962 = vmatpush1.msra.mxu0 %v383
    %963 = vmatprep.subr.mxu0 %v388
    %964 = vmatpush1.msra.mxu0 %v387
    %965 = vmatprep.subr.mxu0 %v392
    %966 = vmatpush1.msra.mxu0 %v391
    %967 = vmatprep.subr.mxu0 %v396
    %968 = vmatpush1.msra.mxu0 %v395
    %969 = vmatprep.subr.mxu0 %v400
    %970 = vmatpush1.msra.mxu0 %v399
    %971 = vmatprep.subr.mxu0 %v404
    %972 = vmatpush1.msra.mxu0 %v403
    %973 = vmatprep.subr.mxu0 %v408
    %974 = vmatpush1.msra.mxu0 %v407
    %975 = vmatprep.subr.mxu0 %v412
    %976 = vmatpush1.msra.mxu0 %v411
    %977 = vmatprep.subr.mxu0 %v416
    %978 = vmatpush1.msra.mxu0 %v415
    %979 = vmatprep.subr.mxu0 %v420
    %980 = vmatpush1.msra.mxu0 %v419
    %981 = vmatprep.subr.mxu0 %v424
    %982 = vmatpush1.msra.mxu0 %v423
    %983 = vmatprep.subr.mxu0 %v428
    %984 = vmatpush1.msra.mxu0 %v427
    %985 = vmatprep.subr.mxu0 %v432
    %986 = vmatpush1.msra.mxu0 %v431
    %987 = vmatprep.subr.mxu0 %v436
    %988 = vmatpush1.msra.mxu0 %v435
    %989 = vmatprep.subr.mxu0 %v440
    %990 = vmatpush1.msra.mxu0 %v439
    %991 = vmatprep.subr.mxu0 0.0
    %992 = vmatpush1.msra.mxu0 0.0
    %993 = vmatprep.subr.mxu0 0.0
    %994 = vmatpush1.msra.mxu0 0.0
    %995 = vmatprep.subr.mxu0 0.0
    %996 = vmatpush1.msra.mxu0 0.0
    %997 = vmatprep.subr.mxu0 0.0
    %998 = vmatpush1.msra.mxu0 0.0
    %999 = vmatprep.subr.mxu0 0.0
    %1000 = vmatpush1.msra.mxu0 0.0
    %1001 = vmatprep.subr.mxu0 0.0
    %1002 = vmatpush1.msra.mxu0 0.0
    %1003 = vmatprep.subr.mxu0 0.0
    %1004 = vmatpush1.msra.mxu0 0.0
    %1005 = vmatprep.subr.mxu0 0.0
    %1006 = vmatpush1.msra.mxu0 0.0
    %1007 = vmatprep.subr.mxu0 0.0
    %1008 = vmatpush1.msra.mxu0 0.0
    %1009 = vmatprep.subr.mxu0 0.0
    %1010 = vmatpush1.msra.mxu0 0.0
    %1011 = vmatprep.subr.mxu0 0.0
    %1012 = vmatpush1.msra.mxu0 0.0
    %1013 = vmatprep.subr.mxu0 0.0
    %1014 = vmatpush1.msra.mxu0 0.0
    %1015 = vmatprep.subr.mxu0 0.0
    %1016 = vmatpush1.msra.mxu0 0.0
    %1017 = vmatprep.subr.mxu0 0.0
    %1018 = vmatpush1.msra.mxu0 0.0
    %1019 = vmatprep.subr.mxu0 0.0
    %1020 = vmatpush1.msra.mxu0 0.0
    %1021 = vmatprep.subr.mxu0 0.0
    %1022 = vmatpush1.msra.mxu0 0.0
    %1023 = vmatprep.mubr.f32.mxu0 0.0
    %1024 = vmatmul.mubr.f32.gmra.mrb[0].mxu0 %v956
    %v1025 = vpop.f32.mrb[0].mxu0
    %v1026 = vadd.f32 0.0, %v1025
    %v1027 = vpop.f32.mrb[0].mxu0
    %v1028 = vadd.f32 0.0, %v1027
    %1029 = vdwg.mxu0
    %1030 = vmatprep.subr.mxu0 %v382
    %1031 = vmatpush1.msra.mxu0 %v381
    %1032 = vmatprep.subr.mxu0 %v386
    %1033 = vmatpush1.msra.mxu0 %v385
    %1034 = vmatprep.subr.mxu0 %v390
    %1035 = vmatpush1.msra.mxu0 %v389
    %1036 = vmatprep.subr.mxu0 %v394
    %1037 = vmatpush1.msra.mxu0 %v393
    %1038 = vmatprep.subr.mxu0 %v398
    %1039 = vmatpush1.msra.mxu0 %v397
    %1040 = vmatprep.subr.mxu0 %v402
    %1041 = vmatpush1.msra.mxu0 %v401
    %1042 = vmatprep.subr.mxu0 %v406
    %1043 = vmatpush1.msra.mxu0 %v405
    %1044 = vmatprep.subr.mxu0 %v410
    %1045 = vmatpush1.msra.mxu0 %v409
    %1046 = vmatprep.subr.mxu0 %v414
    %1047 = vmatpush1.msra.mxu0 %v413
    %1048 = vmatprep.subr.mxu0 %v418
    %1049 = vmatpush1.msra.mxu0 %v417
    %1050 = vmatprep.subr.mxu0 %v422
    %1051 = vmatpush1.msra.mxu0 %v421
    %1052 = vmatprep.subr.mxu0 %v426
    %1053 = vmatpush1.msra.mxu0 %v425
    %1054 = vmatprep.subr.mxu0 %v430
    %1055 = vmatpush1.msra.mxu0 %v429
    %1056 = vmatprep.subr.mxu0 %v434
    %1057 = vmatpush1.msra.mxu0 %v433
    %1058 = vmatprep.subr.mxu0 %v438
    %1059 = vmatpush1.msra.mxu0 %v437
    %1060 = vmatprep.subr.mxu0 %v442
    %1061 = vmatpush1.msra.mxu0 %v441
    %1062 = vmatprep.subr.mxu0 0.0
    %1063 = vmatpush1.msra.mxu0 0.0
    %1064 = vmatprep.subr.mxu0 0.0
    %1065 = vmatpush1.msra.mxu0 0.0
    %1066 = vmatprep.subr.mxu0 0.0
    %1067 = vmatpush1.msra.mxu0 0.0
    %1068 = vmatprep.subr.mxu0 0.0
    %1069 = vmatpush1.msra.mxu0 0.0
    %1070 = vmatprep.subr.mxu0 0.0
    %1071 = vmatpush1.msra.mxu0 0.0
    %1072 = vmatprep.subr.mxu0 0.0
    %1073 = vmatpush1.msra.mxu0 0.0
    %1074 = vmatprep.subr.mxu0 0.0
    %1075 = vmatpush1.msra.mxu0 0.0
    %1076 = vmatprep.subr.mxu0 0.0
    %1077 = vmatpush1.msra.mxu0 0.0
    %1078 = vmatprep.subr.mxu0 0.0
    %1079 = vmatpush1.msra.mxu0 0.0
    %1080 = vmatprep.subr.mxu0 0.0
    %1081 = vmatpush1.msra.mxu0 0.0
    %1082 = vmatprep.subr.mxu0 0.0
    %1083 = vmatpush1.msra.mxu0 0.0
    %1084 = vmatprep.subr.mxu0 0.0
    %1085 = vmatpush1.msra.mxu0 0.0
    %1086 = vmatprep.subr.mxu0 0.0
    %1087 = vmatpush1.msra.mxu0 0.0
    %1088 = vmatprep.subr.mxu0 0.0
    %1089 = vmatpush1.msra.mxu0 0.0
    %1090 = vmatprep.subr.mxu0 0.0
    %1091 = vmatpush1.msra.mxu0 0.0
    %1092 = vmatprep.subr.mxu0 0.0
    %1093 = vmatpush1.msra.mxu0 0.0
    %1094 = vmatprep.mubr.f32.mxu0 0.0
    %1095 = vmatmul.mubr.f32.gmra.mrb[0].mxu0 %v956
    %v1096 = vpop.f32.mrb[0].mxu0
    %v1097 = vadd.f32 0.0, %v1096
    %v1098 = vpop.f32.mrb[0].mxu0
    %v1099 = vadd.f32 0.0, %v1098
    %1100 = vdwg.mxu0
    %v1101 = vadd.f32 %v238, %v1026
    %v1102 = vadd.f32 %v240, %v1028
    %v1103 = vadd.f32 %v351, %v1097
    %v1104 = vadd.f32 %v353, %v1099
    %v1105 = vxor.u32 %v1101, 2147483648
    %v1106 = vxor.u32 %v1102, 2147483648
    %v1107 = vxor.u32 %v1103, 2147483648
    %v1108 = vmul.f32 %v1105, 1.442695
    %v1109 = vpow.pop %v1108
    %v1110 = vmul.f32 %v1106, 1.442695
    %v1111 = vpow.pop %v1110
    %v1112 = vmul.f32 %v1107, 1.442695
    %v1113 = vpow.pop %v1112
    %v1114 = vadd.f32 %v1109, 1.0
    %v1115 = vadd.f32 %v1111, 1.0
    %v1116 = vadd.f32 %v1113, 1.0
    %v1117 = vrcp.pop %v1114
    %v1118 = vmul.f32 1.0, %v1117
    %v1119 = vrcp.pop %v1115
    %v1120 = vmul.f32 1.0, %v1119
    %v1121 = vrcp.pop %v1116
    %v1122 = vmul.f32 1.0, %v1121
    %v1123 = vtanh.pop %v1104
    %v1124 = vmul.f32 %v1120, %v954
    %v1125 = vmul.f32 %v1118, %v1123
    %v1126 = vadd.f32 %v1124, %v1125
    %v1127 = vtanh.pop %v1126
    %v1128 = vmul.f32 %v1122, %v1127
    %1129 = vst [vmem:[#allocation2 + $0x18] sm:$0xff] %v1128
    %1130 = vst [vmem:[#allocation3 + $0x20] sm:$0xff] %v1128
    %1131 = vmatprep.subr.mxu0 %v380
    %1132 = vmatpush1.msra.mxu0 %v379
    %1133 = vmatprep.subr.mxu0 %v384
    %1134 = vmatpush1.msra.mxu0 %v383
    %1135 = vmatprep.subr.mxu0 %v388
    %1136 = vmatpush1.msra.mxu0 %v387
    %1137 = vmatprep.subr.mxu0 %v392
    %1138 = vmatpush1.msra.mxu0 %v391
    %1139 = vmatprep.subr.mxu0 %v396
    %1140 = vmatpush1.msra.mxu0 %v395
    %1141 = vmatprep.subr.mxu0 %v400
    %1142 = vmatpush1.msra.mxu0 %v399
    %1143 = vmatprep.subr.mxu0 %v404
    %1144 = vmatpush1.msra.mxu0 %v403
    %1145 = vmatprep.subr.mxu0 %v408
    %1146 = vmatpush1.msra.mxu0 %v407
    %1147 = vmatprep.subr.mxu0 %v412
    %1148 = vmatpush1.msra.mxu0 %v411
    %1149 = vmatprep.subr.mxu0 %v416
    %1150 = vmatpush1.msra.mxu0 %v415
    %1151 = vmatprep.subr.mxu0 %v420
    %1152 = vmatpush1.msra.mxu0 %v419
    %1153 = vmatprep.subr.mxu0 %v424
    %1154 = vmatpush1.msra.mxu0 %v423
    %1155 = vmatprep.subr.mxu0 %v428
    %1156 = vmatpush1.msra.mxu0 %v427
    %1157 = vmatprep.subr.mxu0 %v432
    %1158 = vmatpush1.msra.mxu0 %v431
    %1159 = vmatprep.subr.mxu0 %v436
    %1160 = vmatpush1.msra.mxu0 %v435
    %1161 = vmatprep.subr.mxu0 %v440
    %1162 = vmatpush1.msra.mxu0 %v439
    %1163 = vmatprep.subr.mxu0 0.0
    %1164 = vmatpush1.msra.mxu0 0.0
    %1165 = vmatprep.subr.mxu0 0.0
    %1166 = vmatpush1.msra.mxu0 0.0
    %1167 = vmatprep.subr.mxu0 0.0
    %1168 = vmatpush1.msra.mxu0 0.0
    %1169 = vmatprep.subr.mxu0 0.0
    %1170 = vmatpush1.msra.mxu0 0.0
    %1171 = vmatprep.subr.mxu0 0.0
    %1172 = vmatpush1.msra.mxu0 0.0
    %1173 = vmatprep.subr.mxu0 0.0
    %1174 = vmatpush1.msra.mxu0 0.0
    %1175 = vmatprep.subr.mxu0 0.0
    %1176 = vmatpush1.msra.mxu0 0.0
    %1177 = vmatprep.subr.mxu0 0.0
    %1178 = vmatpush1.msra.mxu0 0.0
    %1179 = vmatprep.subr.mxu0 0.0
    %1180 = vmatpush1.msra.mxu0 0.0
    %1181 = vmatprep.subr.mxu0 0.0
    %1182 = vmatpush1.msra.mxu0 0.0
    %1183 = vmatprep.subr.mxu0 0.0
    %1184 = vmatpush1.msra.mxu0 0.0
    %1185 = vmatprep.subr.mxu0 0.0
    %1186 = vmatpush1.msra.mxu0 0.0
    %1187 = vmatprep.subr.mxu0 0.0
    %1188 = vmatpush1.msra.mxu0 0.0
    %1189 = vmatprep.subr.mxu0 0.0
    %1190 = vmatpush1.msra.mxu0 0.0
    %1191 = vmatprep.subr.mxu0 0.0
    %1192 = vmatpush1.msra.mxu0 0.0
    %1193 = vmatprep.subr.mxu0 0.0
    %1194 = vmatpush1.msra.mxu0 0.0
    %1195 = vmatprep.mubr.f32.mxu0 0.0
    %1196 = vmatmul.mubr.f32.gmra.mrb[0].mxu0 %v1128
    %v1197 = vpop.f32.mrb[0].mxu0
    %v1198 = vadd.f32 0.0, %v1197
    %v1199 = vpop.f32.mrb[0].mxu0
    %v1200 = vadd.f32 0.0, %v1199
    %1201 = vdwg.mxu0
    %1202 = vmatprep.subr.mxu0 %v382
    %1203 = vmatpush1.msra.mxu0 %v381
    %1204 = vmatprep.subr.mxu0 %v386
    %1205 = vmatpush1.msra.mxu0 %v385
    %1206 = vmatprep.subr.mxu0 %v390
    %1207 = vmatpush1.msra.mxu0 %v389
    %1208 = vmatprep.subr.mxu0 %v394
    %1209 = vmatpush1.msra.mxu0 %v393
    %1210 = vmatprep.subr.mxu0 %v398
    %1211 = vmatpush1.msra.mxu0 %v397
    %1212 = vmatprep.subr.mxu0 %v402
    %1213 = vmatpush1.msra.mxu0 %v401
    %1214 = vmatprep.subr.mxu0 %v406
    %1215 = vmatpush1.msra.mxu0 %v405
    %1216 = vmatprep.subr.mxu0 %v410
    %1217 = vmatpush1.msra.mxu0 %v409
    %1218 = vmatprep.subr.mxu0 %v414
    %1219 = vmatpush1.msra.mxu0 %v413
    %1220 = vmatprep.subr.mxu0 %v418
    %1221 = vmatpush1.msra.mxu0 %v417
    %1222 = vmatprep.subr.mxu0 %v422
    %1223 = vmatpush1.msra.mxu0 %v421
    %1224 = vmatprep.subr.mxu0 %v426
    %1225 = vmatpush1.msra.mxu0 %v425
    %1226 = vmatprep.subr.mxu0 %v430
    %1227 = vmatpush1.msra.mxu0 %v429
    %1228 = vmatprep.subr.mxu0 %v434
    %1229 = vmatpush1.msra.mxu0 %v433
    %1230 = vmatprep.subr.mxu0 %v438
    %1231 = vmatpush1.msra.mxu0 %v437
    %1232 = vmatprep.subr.mxu0 %v442
    %1233 = vmatpush1.msra.mxu0 %v441
    %1234 = vmatprep.subr.mxu0 0.0
    %1235 = vmatpush1.msra.mxu0 0.0
    %1236 = vmatprep.subr.mxu0 0.0
    %1237 = vmatpush1.msra.mxu0 0.0
    %1238 = vmatprep.subr.mxu0 0.0
    %1239 = vmatpush1.msra.mxu0 0.0
    %1240 = vmatprep.subr.mxu0 0.0
    %1241 = vmatpush1.msra.mxu0 0.0
    %1242 = vmatprep.subr.mxu0 0.0
    %1243 = vmatpush1.msra.mxu0 0.0
    %1244 = vmatprep.subr.mxu0 0.0
    %1245 = vmatpush1.msra.mxu0 0.0
    %1246 = vmatprep.subr.mxu0 0.0
    %1247 = vmatpush1.msra.mxu0 0.0
    %1248 = vmatprep.subr.mxu0 0.0
    %1249 = vmatpush1.msra.mxu0 0.0
    %1250 = vmatprep.subr.mxu0 0.0
    %1251 = vmatpush1.msra.mxu0 0.0
    %1252 = vmatprep.subr.mxu0 0.0
    %1253 = vmatpush1.msra.mxu0 0.0
    %1254 = vmatprep.subr.mxu0 0.0
    %1255 = vmatpush1.msra.mxu0 0.0
    %1256 = vmatprep.subr.mxu0 0.0
    %1257 = vmatpush1.msra.mxu0 0.0
    %1258 = vmatprep.subr.mxu0 0.0
    %1259 = vmatpush1.msra.mxu0 0.0
    %1260 = vmatprep.subr.mxu0 0.0
    %1261 = vmatpush1.msra.mxu0 0.0
    %1262 = vmatprep.subr.mxu0 0.0
    %1263 = vmatpush1.msra.mxu0 0.0
    %1264 = vmatprep.subr.mxu0 0.0
    %1265 = vmatpush1.msra.mxu0 0.0
    %1266 = vmatprep.mubr.f32.mxu0 0.0
    %1267 = vmatmul.mubr.f32.gmra.mrb[0].mxu0 %v1128
    %v1268 = vpop.f32.mrb[0].mxu0
    %v1269 = vadd.f32 0.0, %v1268
    %v1270 = vpop.f32.mrb[0].mxu0
    %v1271 = vadd.f32 0.0, %v1270
    %1272 = vdwg.mxu0
    %v1273 = vadd.f32 %v244, %v1198
    %v1274 = vadd.f32 %v246, %v1200
    %v1275 = vadd.f32 %v357, %v1269
    %v1276 = vadd.f32 %v359, %v1271
    %v1277 = vxor.u32 %v1273, 2147483648
    %v1278 = vxor.u32 %v1274, 2147483648
    %v1279 = vxor.u32 %v1275, 2147483648
    %v1280 = vmul.f32 %v1277, 1.442695
    %v1281 = vpow.pop %v1280
    %v1282 = vmul.f32 %v1278, 1.442695
    %v1283 = vpow.pop %v1282
    %v1284 = vmul.f32 %v1279, 1.442695
    %v1285 = vpow.pop %v1284
    %v1286 = vadd.f32 %v1281, 1.0
    %v1287 = vadd.f32 %v1283, 1.0
    %v1288 = vadd.f32 %v1285, 1.0
    %v1289 = vrcp.pop %v1286
    %v1290 = vmul.f32 1.0, %v1289
    %v1291 = vrcp.pop %v1287
    %v1292 = vmul.f32 1.0, %v1291
    %v1293 = vrcp.pop %v1288
    %v1294 = vmul.f32 1.0, %v1293
    %v1295 = vtanh.pop %v1276
    %v1296 = vmul.f32 %v1292, %v1126
    %v1297 = vmul.f32 %v1290, %v1295
    %v1298 = vadd.f32 %v1296, %v1297
    %v1299 = vtanh.pop %v1298
    %v1300 = vmul.f32 %v1294, %v1299
    %1301 = vst [vmem:[#allocation2 + $0x20] sm:$0xff] %v1300
    %1302 = vst [vmem:[#allocation3 + $0x18] sm:$0xff] %v1300
    %1303 = vmatprep.subr.mxu0 %v380
    %1304 = vmatpush1.msra.mxu0 %v379
    %1305 = vmatprep.subr.mxu0 %v384
    %1306 = vmatpush1.msra.mxu0 %v383
    %1307 = vmatprep.subr.mxu0 %v388
    %1308 = vmatpush1.msra.mxu0 %v387
    %1309 = vmatprep.subr.mxu0 %v392
    %1310 = vmatpush1.msra.mxu0 %v391
    %1311 = vmatprep.subr.mxu0 %v396
    %1312 = vmatpush1.msra.mxu0 %v395
    %1313 = vmatprep.subr.mxu0 %v400
    %1314 = vmatpush1.msra.mxu0 %v399
    %1315 = vmatprep.subr.mxu0 %v404
    %1316 = vmatpush1.msra.mxu0 %v403
    %1317 = vmatprep.subr.mxu0 %v408
    %1318 = vmatpush1.msra.mxu0 %v407
    %1319 = vmatprep.subr.mxu0 %v412
    %1320 = vmatpush1.msra.mxu0 %v411
    %1321 = vmatprep.subr.mxu0 %v416
    %1322 = vmatpush1.msra.mxu0 %v415
    %1323 = vmatprep.subr.mxu0 %v420
    %1324 = vmatpush1.msra.mxu0 %v419
    %1325 = vmatprep.subr.mxu0 %v424
    %1326 = vmatpush1.msra.mxu0 %v423
    %1327 = vmatprep.subr.mxu0 %v428
    %1328 = vmatpush1.msra.mxu0 %v427
    %1329 = vmatprep.subr.mxu0 %v432
    %1330 = vmatpush1.msra.mxu0 %v431
    %1331 = vmatprep.subr.mxu0 %v436
    %1332 = vmatpush1.msra.mxu0 %v435
    %1333 = vmatprep.subr.mxu0 %v440
    %1334 = vmatpush1.msra.mxu0 %v439
    %1335 = vmatprep.subr.mxu0 0.0
    %1336 = vmatpush1.msra.mxu0 0.0
    %1337 = vmatprep.subr.mxu0 0.0
    %1338 = vmatpush1.msra.mxu0 0.0
    %1339 = vmatprep.subr.mxu0 0.0
    %1340 = vmatpush1.msra.mxu0 0.0
    %1341 = vmatprep.subr.mxu0 0.0
    %1342 = vmatpush1.msra.mxu0 0.0
    %1343 = vmatprep.subr.mxu0 0.0
    %1344 = vmatpush1.msra.mxu0 0.0
    %1345 = vmatprep.subr.mxu0 0.0
    %1346 = vmatpush1.msra.mxu0 0.0
    %1347 = vmatprep.subr.mxu0 0.0
    %1348 = vmatpush1.msra.mxu0 0.0
    %1349 = vmatprep.subr.mxu0 0.0
    %1350 = vmatpush1.msra.mxu0 0.0
    %1351 = vmatprep.subr.mxu0 0.0
    %1352 = vmatpush1.msra.mxu0 0.0
    %1353 = vmatprep.subr.mxu0 0.0
    %1354 = vmatpush1.msra.mxu0 0.0
    %1355 = vmatprep.subr.mxu0 0.0
    %1356 = vmatpush1.msra.mxu0 0.0
    %1357 = vmatprep.subr.mxu0 0.0
    %1358 = vmatpush1.msra.mxu0 0.0
    %1359 = vmatprep.subr.mxu0 0.0
    %1360 = vmatpush1.msra.mxu0 0.0
    %1361 = vmatprep.subr.mxu0 0.0
    %1362 = vmatpush1.msra.mxu0 0.0
    %1363 = vmatprep.subr.mxu0 0.0
    %1364 = vmatpush1.msra.mxu0 0.0
    %1365 = vmatprep.subr.mxu0 0.0
    %1366 = vmatpush1.msra.mxu0 0.0
    %1367 = vmatprep.mubr.f32.mxu0 0.0
    %1368 = vmatmul.mubr.f32.gmra.mrb[0].mxu0 %v1300
    %v1369 = vpop.f32.mrb[0].mxu0
    %v1370 = vadd.f32 0.0, %v1369
    %v1371 = vpop.f32.mrb[0].mxu0
    %v1372 = vadd.f32 0.0, %v1371
    %1373 = vdwg.mxu0
    %1374 = vmatprep.subr.mxu0 %v382
    %1375 = vmatpush1.msra.mxu0 %v381
    %1376 = vmatprep.subr.mxu0 %v386
    %1377 = vmatpush1.msra.mxu0 %v385
    %1378 = vmatprep.subr.mxu0 %v390
    %1379 = vmatpush1.msra.mxu0 %v389
    %1380 = vmatprep.subr.mxu0 %v394
    %1381 = vmatpush1.msra.mxu0 %v393
    %1382 = vmatprep.subr.mxu0 %v398
    %1383 = vmatpush1.msra.mxu0 %v397
    %1384 = vmatprep.subr.mxu0 %v402
    %1385 = vmatpush1.msra.mxu0 %v401
    %1386 = vmatprep.subr.mxu0 %v406
    %1387 = vmatpush1.msra.mxu0 %v405
    %1388 = vmatprep.subr.mxu0 %v410
    %1389 = vmatpush1.msra.mxu0 %v409
    %1390 = vmatprep.subr.mxu0 %v414
    %1391 = vmatpush1.msra.mxu0 %v413
    %1392 = vmatprep.subr.mxu0 %v418
    %1393 = vmatpush1.msra.mxu0 %v417
    %1394 = vmatprep.subr.mxu0 %v422
    %1395 = vmatpush1.msra.mxu0 %v421
    %1396 = vmatprep.subr.mxu0 %v426
    %1397 = vmatpush1.msra.mxu0 %v425
    %1398 = vmatprep.subr.mxu0 %v430
    %1399 = vmatpush1.msra.mxu0 %v429
    %1400 = vmatprep.subr.mxu0 %v434
    %1401 = vmatpush1.msra.mxu0 %v433
    %1402 = vmatprep.subr.mxu0 %v438
    %1403 = vmatpush1.msra.mxu0 %v437
    %1404 = vmatprep.subr.mxu0 %v442
    %1405 = vmatpush1.msra.mxu0 %v441
    %1406 = vmatprep.subr.mxu0 0.0
    %1407 = vmatpush1.msra.mxu0 0.0
    %1408 = vmatprep.subr.mxu0 0.0
    %1409 = vmatpush1.msra.mxu0 0.0
    %1410 = vmatprep.subr.mxu0 0.0
    %1411 = vmatpush1.msra.mxu0 0.0
    %1412 = vmatprep.subr.mxu0 0.0
    %1413 = vmatpush1.msra.mxu0 0.0
    %1414 = vmatprep.subr.mxu0 0.0
    %1415 = vmatpush1.msra.mxu0 0.0
    %1416 = vmatprep.subr.mxu0 0.0
    %1417 = vmatpush1.msra.mxu0 0.0
    %1418 = vmatprep.subr.mxu0 0.0
    %1419 = vmatpush1.msra.mxu0 0.0
    %1420 = vmatprep.subr.mxu0 0.0
    %1421 = vmatpush1.msra.mxu0 0.0
    %1422 = vmatprep.subr.mxu0 0.0
    %1423 = vmatpush1.msra.mxu0 0.0
    %1424 = vmatprep.subr.mxu0 0.0
    %1425 = vmatpush1.msra.mxu0 0.0
    %1426 = vmatprep.subr.mxu0 0.0
    %1427 = vmatpush1.msra.mxu0 0.0
    %1428 = vmatprep.subr.mxu0 0.0
    %1429 = vmatpush1.msra.mxu0 0.0
    %1430 = vmatprep.subr.mxu0 0.0
    %1431 = vmatpush1.msra.mxu0 0.0
    %1432 = vmatprep.subr.mxu0 0.0
    %1433 = vmatpush1.msra.mxu0 0.0
    %1434 = vmatprep.subr.mxu0 0.0
    %1435 = vmatpush1.msra.mxu0 0.0
    %1436 = vmatprep.subr.mxu0 0.0
    %1437 = vmatpush1.msra.mxu0 0.0
    %1438 = vmatprep.mubr.f32.mxu0 0.0
    %1439 = vmatmul.mubr.f32.gmra.mrb[0].mxu0 %v1300
    %v1440 = vpop.f32.mrb[0].mxu0
    %v1441 = vadd.f32 0.0, %v1440
    %v1442 = vpop.f32.mrb[0].mxu0
    %v1443 = vadd.f32 0.0, %v1442
    %1444 = vdwg.mxu0
    %v1445 = vadd.f32 %v250, %v1370
    %v1446 = vadd.f32 %v252, %v1372
    %v1447 = vadd.f32 %v363, %v1441
    %v1448 = vadd.f32 %v365, %v1443
    %v1449 = vxor.u32 %v1445, 2147483648
    %v1450 = vxor.u32 %v1446, 2147483648
    %v1451 = vxor.u32 %v1447, 2147483648
    %v1452 = vmul.f32 %v1449, 1.442695
    %v1453 = vpow.pop %v1452
    %v1454 = vmul.f32 %v1450, 1.442695
    %v1455 = vpow.pop %v1454
    %v1456 = vmul.f32 %v1451, 1.442695
    %v1457 = vpow.pop %v1456
    %v1458 = vadd.f32 %v1453, 1.0
    %v1459 = vadd.f32 %v1455, 1.0
    %v1460 = vadd.f32 %v1457, 1.0
    %v1461 = vrcp.pop %v1458
    %v1462 = vmul.f32 1.0, %v1461
    %v1463 = vrcp.pop %v1459
    %v1464 = vmul.f32 1.0, %v1463
    %v1465 = vrcp.pop %v1460
    %v1466 = vmul.f32 1.0, %v1465
    %v1467 = vtanh.pop %v1448
    %v1468 = vmul.f32 %v1464, %v1298
    %v1469 = vmul.f32 %v1462, %v1467
    %v1470 = vadd.f32 %v1468, %v1469
    %v1471 = vtanh.pop %v1470
    %v1472 = vmul.f32 %v1466, %v1471
    %1473 = vst [vmem:[#allocation2 + $0x28] sm:$0xff] %v1472
    %1474 = vst [vmem:[#allocation3 + $0x10] sm:$0xff] %v1472
    %1475 = vmatprep.subr.mxu0 %v380
    %1476 = vmatpush1.msra.mxu0 %v379
    %1477 = vmatprep.subr.mxu0 %v384
    %1478 = vmatpush1.msra.mxu0 %v383
    %1479 = vmatprep.subr.mxu0 %v388
    %1480 = vmatpush1.msra.mxu0 %v387
    %1481 = vmatprep.subr.mxu0 %v392
    %1482 = vmatpush1.msra.mxu0 %v391
    %1483 = vmatprep.subr.mxu0 %v396
    %1484 = vmatpush1.msra.mxu0 %v395
    %1485 = vmatprep.subr.mxu0 %v400
    %1486 = vmatpush1.msra.mxu0 %v399
    %1487 = vmatprep.subr.mxu0 %v404
    %1488 = vmatpush1.msra.mxu0 %v403
    %1489 = vmatprep.subr.mxu0 %v408
    %1490 = vmatpush1.msra.mxu0 %v407
    %1491 = vmatprep.subr.mxu0 %v412
    %1492 = vmatpush1.msra.mxu0 %v411
    %1493 = vmatprep.subr.mxu0 %v416
    %1494 = vmatpush1.msra.mxu0 %v415
    %1495 = vmatprep.subr.mxu0 %v420
    %1496 = vmatpush1.msra.mxu0 %v419
    %1497 = vmatprep.subr.mxu0 %v424
    %1498 = vmatpush1.msra.mxu0 %v423
    %1499 = vmatprep.subr.mxu0 %v428
    %1500 = vmatpush1.msra.mxu0 %v427
    %1501 = vmatprep.subr.mxu0 %v432
    %1502 = vmatpush1.msra.mxu0 %v431
    %1503 = vmatprep.subr.mxu0 %v436
    %1504 = vmatpush1.msra.mxu0 %v435
    %1505 = vmatprep.subr.mxu0 %v440
    %1506 = vmatpush1.msra.mxu0 %v439
    %1507 = vmatprep.subr.mxu0 0.0
    %1508 = vmatpush1.msra.mxu0 0.0
    %1509 = vmatprep.subr.mxu0 0.0
    %1510 = vmatpush1.msra.mxu0 0.0
    %1511 = vmatprep.subr.mxu0 0.0
    %1512 = vmatpush1.msra.mxu0 0.0
    %1513 = vmatprep.subr.mxu0 0.0
    %1514 = vmatpush1.msra.mxu0 0.0
    %1515 = vmatprep.subr.mxu0 0.0
    %1516 = vmatpush1.msra.mxu0 0.0
    %1517 = vmatprep.subr.mxu0 0.0
    %1518 = vmatpush1.msra.mxu0 0.0
    %1519 = vmatprep.subr.mxu0 0.0
    %1520 = vmatpush1.msra.mxu0 0.0
    %1521 = vmatprep.subr.mxu0 0.0
    %1522 = vmatpush1.msra.mxu0 0.0
    %1523 = vmatprep.subr.mxu0 0.0
    %1524 = vmatpush1.msra.mxu0 0.0
    %1525 = vmatprep.subr.mxu0 0.0
    %1526 = vmatpush1.msra.mxu0 0.0
    %1527 = vmatprep.subr.mxu0 0.0
    %1528 = vmatpush1.msra.mxu0 0.0
    %1529 = vmatprep.subr.mxu0 0.0
    %1530 = vmatpush1.msra.mxu0 0.0
    %1531 = vmatprep.subr.mxu0 0.0
    %1532 = vmatpush1.msra.mxu0 0.0
    %1533 = vmatprep.subr.mxu0 0.0
    %1534 = vmatpush1.msra.mxu0 0.0
    %1535 = vmatprep.subr.mxu0 0.0
    %1536 = vmatpush1.msra.mxu0 0.0
    %1537 = vmatprep.subr.mxu0 0.0
    %1538 = vmatpush1.msra.mxu0 0.0
    %1539 = vmatprep.mubr.f32.mxu0 0.0
    %1540 = vmatmul.mubr.f32.gmra.mrb[0].mxu0 %v1472
    %v1541 = vpop.f32.mrb[0].mxu0
    %v1542 = vadd.f32 0.0, %v1541
    %v1543 = vpop.f32.mrb[0].mxu0
    %v1544 = vadd.f32 0.0, %v1543
    %1545 = vdwg.mxu0
    %1546 = vmatprep.subr.mxu0 %v382
    %1547 = vmatpush1.msra.mxu0 %v381
    %1548 = vmatprep.subr.mxu0 %v386
    %1549 = vmatpush1.msra.mxu0 %v385
    %1550 = vmatprep.subr.mxu0 %v390
    %1551 = vmatpush1.msra.mxu0 %v389
    %1552 = vmatprep.subr.mxu0 %v394
    %1553 = vmatpush1.msra.mxu0 %v393
    %1554 = vmatprep.subr.mxu0 %v398
    %1555 = vmatpush1.msra.mxu0 %v397
    %1556 = vmatprep.subr.mxu0 %v402
    %1557 = vmatpush1.msra.mxu0 %v401
    %1558 = vmatprep.subr.mxu0 %v406
    %1559 = vmatpush1.msra.mxu0 %v405
    %1560 = vmatprep.subr.mxu0 %v410
    %1561 = vmatpush1.msra.mxu0 %v409
    %1562 = vmatprep.subr.mxu0 %v414
    %1563 = vmatpush1.msra.mxu0 %v413
    %1564 = vmatprep.subr.mxu0 %v418
    %1565 = vmatpush1.msra.mxu0 %v417
    %1566 = vmatprep.subr.mxu0 %v422
    %1567 = vmatpush1.msra.mxu0 %v421
    %1568 = vmatprep.subr.mxu0 %v426
    %1569 = vmatpush1.msra.mxu0 %v425
    %1570 = vmatprep.subr.mxu0 %v430
    %1571 = vmatpush1.msra.mxu0 %v429
    %1572 = vmatprep.subr.mxu0 %v434
    %1573 = vmatpush1.msra.mxu0 %v433
    %1574 = vmatprep.subr.mxu0 %v438
    %1575 = vmatpush1.msra.mxu0 %v437
    %1576 = vmatprep.subr.mxu0 %v442
    %1577 = vmatpush1.msra.mxu0 %v441
    %1578 = vmatprep.subr.mxu0 0.0
    %1579 = vmatpush1.msra.mxu0 0.0
    %1580 = vmatprep.subr.mxu0 0.0
    %1581 = vmatpush1.msra.mxu0 0.0
    %1582 = vmatprep.subr.mxu0 0.0
    %1583 = vmatpush1.msra.mxu0 0.0
    %1584 = vmatprep.subr.mxu0 0.0
    %1585 = vmatpush1.msra.mxu0 0.0
    %1586 = vmatprep.subr.mxu0 0.0
    %1587 = vmatpush1.msra.mxu0 0.0
    %1588 = vmatprep.subr.mxu0 0.0
    %1589 = vmatpush1.msra.mxu0 0.0
    %1590 = vmatprep.subr.mxu0 0.0
    %1591 = vmatpush1.msra.mxu0 0.0
    %1592 = vmatprep.subr.mxu0 0.0
    %1593 = vmatpush1.msra.mxu0 0.0
    %1594 = vmatprep.subr.mxu0 0.0
    %1595 = vmatpush1.msra.mxu0 0.0
    %1596 = vmatprep.subr.mxu0 0.0
    %1597 = vmatpush1.msra.mxu0 0.0
    %1598 = vmatprep.subr.mxu0 0.0
    %1599 = vmatpush1.msra.mxu0 0.0
    %1600 = vmatprep.subr.mxu0 0.0
    %1601 = vmatpush1.msra.mxu0 0.0
    %1602 = vmatprep.subr.mxu0 0.0
    %1603 = vmatpush1.msra.mxu0 0.0
    %1604 = vmatprep.subr.mxu0 0.0
    %1605 = vmatpush1.msra.mxu0 0.0
    %1606 = vmatprep.subr.mxu0 0.0
    %1607 = vmatpush1.msra.mxu0 0.0
    %1608 = vmatprep.subr.mxu0 0.0
    %1609 = vmatpush1.msra.mxu0 0.0
    %1610 = vmatprep.mubr.f32.mxu0 0.0
    %1611 = vmatmul.mubr.f32.gmra.mrb[0].mxu0 %v1472
    %v1612 = vpop.f32.mrb[0].mxu0
    %v1613 = vadd.f32 0.0, %v1612
    %v1614 = vpop.f32.mrb[0].mxu0
    %v1615 = vadd.f32 0.0, %v1614
    %1616 = vdwg.mxu0
    %v1617 = vadd.f32 %v256, %v1542
    %v1618 = vadd.f32 %v258, %v1544
    %v1619 = vadd.f32 %v369, %v1613
    %v1620 = vadd.f32 %v371, %v1615
    %v1621 = vxor.u32 %v1617, 2147483648
    %v1622 = vxor.u32 %v1618, 2147483648
    %v1623 = vxor.u32 %v1619, 2147483648
    %v1624 = vmul.f32 %v1621, 1.442695
    %v1625 = vpow.pop %v1624
    %v1626 = vmul.f32 %v1622, 1.442695
    %v1627 = vpow.pop %v1626
    %v1628 = vmul.f32 %v1623, 1.442695
    %v1629 = vpow.pop %v1628
    %v1630 = vadd.f32 %v1625, 1.0
    %v1631 = vadd.f32 %v1627, 1.0
    %v1632 = vadd.f32 %v1629, 1.0
    %v1633 = vrcp.pop %v1630
    %v1634 = vmul.f32 1.0, %v1633
    %v1635 = vrcp.pop %v1631
    %v1636 = vmul.f32 1.0, %v1635
    %v1637 = vrcp.pop %v1632
    %v1638 = vmul.f32 1.0, %v1637
    %v1639 = vtanh.pop %v1620
    %v1640 = vmul.f32 %v1636, %v1470
    %v1641 = vmul.f32 %v1634, %v1639
    %v1642 = vadd.f32 %v1640, %v1641
    %v1643 = vtanh.pop %v1642
    %v1644 = vmul.f32 %v1638, %v1643
    %1645 = vst [vmem:[#allocation2 + $0x30] sm:$0xff] %v1644
    %1646 = vst [vmem:[#allocation3 + $0x8] sm:$0xff] %v1644
    %1647 = vmatprep.subr.mxu0 %v380
    %1648 = vmatpush1.msra.mxu0 %v379
    %1649 = vmatprep.subr.mxu0 %v384
    %1650 = vmatpush1.msra.mxu0 %v383
    %1651 = vmatprep.subr.mxu0 %v388
    %1652 = vmatpush1.msra.mxu0 %v387
    %1653 = vmatprep.subr.mxu0 %v392
    %1654 = vmatpush1.msra.mxu0 %v391
    %1655 = vmatprep.subr.mxu0 %v396
    %1656 = vmatpush1.msra.mxu0 %v395
    %1657 = vmatprep.subr.mxu0 %v400
    %1658 = vmatpush1.msra.mxu0 %v399
    %1659 = vmatprep.subr.mxu0 %v404
    %1660 = vmatpush1.msra.mxu0 %v403
    %1661 = vmatprep.subr.mxu0 %v408
    %1662 = vmatpush1.msra.mxu0 %v407
    %1663 = vmatprep.subr.mxu0 %v412
    %1664 = vmatpush1.msra.mxu0 %v411
    %1665 = vmatprep.subr.mxu0 %v416
    %1666 = vmatpush1.msra.mxu0 %v415
    %1667 = vmatprep.subr.mxu0 %v420
    %1668 = vmatpush1.msra.mxu0 %v419
    %1669 = vmatprep.subr.mxu0 %v424
    %1670 = vmatpush1.msra.mxu0 %v423
    %1671 = vmatprep.subr.mxu0 %v428
    %1672 = vmatpush1.msra.mxu0 %v427
    %1673 = vmatprep.subr.mxu0 %v432
    %1674 = vmatpush1.msra.mxu0 %v431
    %1675 = vmatprep.subr.mxu0 %v436
    %1676 = vmatpush1.msra.mxu0 %v435
    %1677 = vmatprep.subr.mxu0 %v440
    %1678 = vmatpush1.msra.mxu0 %v439
    %1679 = vmatprep.subr.mxu0 0.0
    %1680 = vmatpush1.msra.mxu0 0.0
    %1681 = vmatprep.subr.mxu0 0.0
    %1682 = vmatpush1.msra.mxu0 0.0
    %1683 = vmatprep.subr.mxu0 0.0
    %1684 = vmatpush1.msra.mxu0 0.0
    %1685 = vmatprep.subr.mxu0 0.0
    %1686 = vmatpush1.msra.mxu0 0.0
    %1687 = vmatprep.subr.mxu0 0.0
    %1688 = vmatpush1.msra.mxu0 0.0
    %1689 = vmatprep.subr.mxu0 0.0
    %1690 = vmatpush1.msra.mxu0 0.0
    %1691 = vmatprep.subr.mxu0 0.0
    %1692 = vmatpush1.msra.mxu0 0.0
    %1693 = vmatprep.subr.mxu0 0.0
    %1694 = vmatpush1.msra.mxu0 0.0
    %1695 = vmatprep.subr.mxu0 0.0
    %1696 = vmatpush1.msra.mxu0 0.0
    %1697 = vmatprep.subr.mxu0 0.0
    %1698 = vmatpush1.msra.mxu0 0.0
    %1699 = vmatprep.subr.mxu0 0.0
    %1700 = vmatpush1.msra.mxu0 0.0
    %1701 = vmatprep.subr.mxu0 0.0
    %1702 = vmatpush1.msra.mxu0 0.0
    %1703 = vmatprep.subr.mxu0 0.0
    %1704 = vmatpush1.msra.mxu0 0.0
    %1705 = vmatprep.subr.mxu0 0.0
    %1706 = vmatpush1.msra.mxu0 0.0
    %1707 = vmatprep.subr.mxu0 0.0
    %1708 = vmatpush1.msra.mxu0 0.0
    %1709 = vmatprep.subr.mxu0 0.0
    %1710 = vmatpush1.msra.mxu0 0.0
    %1711 = vmatprep.mubr.f32.mxu0 0.0
    %1712 = vmatmul.mubr.f32.gmra.mrb[0].mxu0 %v1644
    %v1713 = vpop.f32.mrb[0].mxu0
    %v1714 = vadd.f32 0.0, %v1713
    %v1715 = vpop.f32.mrb[0].mxu0
    %v1716 = vadd.f32 0.0, %v1715
    %1717 = vdwg.mxu0
    %1718 = vmatprep.subr.mxu0 %v382
    %1719 = vmatpush1.msra.mxu0 %v381
    %1720 = vmatprep.subr.mxu0 %v386
    %1721 = vmatpush1.msra.mxu0 %v385
    %1722 = vmatprep.subr.mxu0 %v390
    %1723 = vmatpush1.msra.mxu0 %v389
    %1724 = vmatprep.subr.mxu0 %v394
    %1725 = vmatpush1.msra.mxu0 %v393
    %1726 = vmatprep.subr.mxu0 %v398
    %1727 = vmatpush1.msra.mxu0 %v397
    %1728 = vmatprep.subr.mxu0 %v402
    %1729 = vmatpush1.msra.mxu0 %v401
    %1730 = vmatprep.subr.mxu0 %v406
    %1731 = vmatpush1.msra.mxu0 %v405
    %1732 = vmatprep.subr.mxu0 %v410
    %1733 = vmatpush1.msra.mxu0 %v409
    %1734 = vmatprep.subr.mxu0 %v414
    %1735 = vmatpush1.msra.mxu0 %v413
    %1736 = vmatprep.subr.mxu0 %v418
    %1737 = vmatpush1.msra.mxu0 %v417
    %1738 = vmatprep.subr.mxu0 %v422
    %1739 = vmatpush1.msra.mxu0 %v421
    %1740 = vmatprep.subr.mxu0 %v426
    %1741 = vmatpush1.msra.mxu0 %v425
    %1742 = vmatprep.subr.mxu0 %v430
    %1743 = vmatpush1.msra.mxu0 %v429
    %1744 = vmatprep.subr.mxu0 %v434
    %1745 = vmatpush1.msra.mxu0 %v433
    %1746 = vmatprep.subr.mxu0 %v438
    %1747 = vmatpush1.msra.mxu0 %v437
    %1748 = vmatprep.subr.mxu0 %v442
    %1749 = vmatpush1.msra.mxu0 %v441
    %1750 = vmatprep.subr.mxu0 0.0
    %1751 = vmatpush1.msra.mxu0 0.0
    %1752 = vmatprep.subr.mxu0 0.0
    %1753 = vmatpush1.msra.mxu0 0.0
    %1754 = vmatprep.subr.mxu0 0.0
    %1755 = vmatpush1.msra.mxu0 0.0
    %1756 = vmatprep.subr.mxu0 0.0
    %1757 = vmatpush1.msra.mxu0 0.0
    %1758 = vmatprep.subr.mxu0 0.0
    %1759 = vmatpush1.msra.mxu0 0.0
    %1760 = vmatprep.subr.mxu0 0.0
    %1761 = vmatpush1.msra.mxu0 0.0
    %1762 = vmatprep.subr.mxu0 0.0
    %1763 = vmatpush1.msra.mxu0 0.0
    %1764 = vmatprep.subr.mxu0 0.0
    %1765 = vmatpush1.msra.mxu0 0.0
    %1766 = vmatprep.subr.mxu0 0.0
    %1767 = vmatpush1.msra.mxu0 0.0
    %1768 = vmatprep.subr.mxu0 0.0
    %1769 = vmatpush1.msra.mxu0 0.0
    %1770 = vmatprep.subr.mxu0 0.0
    %1771 = vmatpush1.msra.mxu0 0.0
    %1772 = vmatprep.subr.mxu0 0.0
    %1773 = vmatpush1.msra.mxu0 0.0
    %1774 = vmatprep.subr.mxu0 0.0
    %1775 = vmatpush1.msra.mxu0 0.0
    %1776 = vmatprep.subr.mxu0 0.0
    %1777 = vmatpush1.msra.mxu0 0.0
    %1778 = vmatprep.subr.mxu0 0.0
    %1779 = vmatpush1.msra.mxu0 0.0
    %1780 = vmatprep.subr.mxu0 0.0
    %1781 = vmatpush1.msra.mxu0 0.0
    %1782 = vmatprep.mubr.f32.mxu0 0.0
    %1783 = vmatmul.mubr.f32.gmra.mrb[0].mxu0 %v1644
    %v1784 = vpop.f32.mrb[0].mxu0
    %v1785 = vadd.f32 0.0, %v1784
    %v1786 = vpop.f32.mrb[0].mxu0
    %v1787 = vadd.f32 0.0, %v1786
    %1788 = vdwg.mxu0
    %v1789 = vadd.f32 %v262, %v1714
    %v1790 = vadd.f32 %v264, %v1716
    %v1791 = vadd.f32 %v375, %v1785
    %v1792 = vadd.f32 %v377, %v1787
    %v1793 = vxor.u32 %v1789, 2147483648
    %v1794 = vxor.u32 %v1790, 2147483648
    %v1795 = vxor.u32 %v1791, 2147483648
    %v1796 = vmul.f32 %v1793, 1.442695
    %v1797 = vpow.pop %v1796
    %v1798 = vmul.f32 %v1794, 1.442695
    %v1799 = vpow.pop %v1798
    %v1800 = vmul.f32 %v1795, 1.442695
    %v1801 = vpow.pop %v1800
    %v1802 = vadd.f32 %v1797, 1.0
    %v1803 = vadd.f32 %v1799, 1.0
    %v1804 = vadd.f32 %v1801, 1.0
    %v1805 = vrcp.pop %v1802
    %v1806 = vmul.f32 1.0, %v1805
    %v1807 = vrcp.pop %v1803
    %v1808 = vmul.f32 1.0, %v1807
    %v1809 = vrcp.pop %v1804
    %v1810 = vmul.f32 1.0, %v1809
    %v1811 = vtanh.pop %v1792
    %v1812 = vmul.f32 %v1808, %v1642
    %v1813 = vmul.f32 %v1806, %v1811
    %v1814 = vadd.f32 %v1812, %v1813
    %v1815 = vtanh.pop %v1814
    %v1816 = vmul.f32 %v1810, %v1815
    %1817 = vst [vmem:[#allocation2 + $0x38] sm:$0xff] %v1816
    %1818 = vst [vmem:[#allocation3] sm:$0xff] %v1816
    %v1819 = vld [vmem:[#allocation2] sm:$0xff]
    %v1820 = vld [vmem:[#allocation2 + $0x8] sm:$0xff]
    %v1821 = vld [vmem:[#allocation2 + $0x10] sm:$0xff]
    %v1822 = vld [vmem:[#allocation2 + $0x18] sm:$0xff]
    %v1823 = vld [vmem:[#allocation2 + $0x20] sm:$0xff]
    %v1824 = vld [vmem:[#allocation2 + $0x28] sm:$0xff]
    %v1825 = vld [vmem:[#allocation2 + $0x30] sm:$0xff]
    %v1826 = vld [vmem:[#allocation2 + $0x38] sm:$0xff]
    %v1827 = vld [vmem:[#allocation9] sm:$0xff]
    %v1828 = vld [vmem:[#allocation9 + $0x8] sm:$0xff]
    %v1829 = vld [vmem:[#allocation9 + $0x10] sm:$0xff]
    %v1830 = vld [vmem:[#allocation9 + $0x18] sm:$0xff]
    %v1831 = vld [vmem:[#allocation9 + $0x20] sm:$0xff]
    %v1832 = vld [vmem:[#allocation9 + $0x28] sm:$0xff]
    %v1833 = vld [vmem:[#allocation9 + $0x30] sm:$0xff]
    %v1834 = vld [vmem:[#allocation9 + $0x38] sm:$0xff]
    %v1835 = vld [vmem:[#allocation9 + $0x40] sm:$0xff]
    %v1836 = vld [vmem:[#allocation9 + $0x48] sm:$0xff]
    %v1837 = vld [vmem:[#allocation9 + $0x50] sm:$0xff]
    %v1838 = vld [vmem:[#allocation9 + $0x58] sm:$0xff]
    %v1839 = vld [vmem:[#allocation9 + $0x60] sm:$0xff]
    %v1840 = vld [vmem:[#allocation9 + $0x68] sm:$0xff]
    %v1841 = vld [vmem:[#allocation9 + $0x70] sm:$0xff]
    %v1842 = vld [vmem:[#allocation9 + $0x78] sm:$0xff]
    %v1843 = vld [vmem:[#allocation3] sm:$0xff]
    %v1844 = vld [vmem:[#allocation3 + $0x8] sm:$0xff]
    %v1845 = vld [vmem:[#allocation3 + $0x10] sm:$0xff]
    %v1846 = vld [vmem:[#allocation3 + $0x18] sm:$0xff]
    %v1847 = vld [vmem:[#allocation3 + $0x20] sm:$0xff]
    %v1848 = vld [vmem:[#allocation3 + $0x28] sm:$0xff]
    %v1849 = vld [vmem:[#allocation3 + $0x30] sm:$0xff]
    %v1850 = vld [vmem:[#allocation3 + $0x38] sm:$0xff]
    %v1851 = vld [vmem:[#allocation10] sm:$0xff]
    %v1852 = vld [vmem:[#allocation10 + $0x8] sm:$0xff]
    %v1853 = vld [vmem:[#allocation10 + $0x10] sm:$0xff]
    %v1854 = vld [vmem:[#allocation10 + $0x18] sm:$0xff]
    %v1855 = vld [vmem:[#allocation10 + $0x20] sm:$0xff]
    %v1856 = vld [vmem:[#allocation10 + $0x28] sm:$0xff]
    %v1857 = vld [vmem:[#allocation10 + $0x30] sm:$0xff]
    %v1858 = vld [vmem:[#allocation10 + $0x38] sm:$0xff]
    %v1859 = vld [vmem:[#allocation10 + $0x40] sm:$0xff]
    %v1860 = vld [vmem:[#allocation10 + $0x48] sm:$0xff]
    %v1861 = vld [vmem:[#allocation10 + $0x50] sm:$0xff]
    %v1862 = vld [vmem:[#allocation10 + $0x58] sm:$0xff]
    %v1863 = vld [vmem:[#allocation10 + $0x60] sm:$0xff]
    %v1864 = vld [vmem:[#allocation10 + $0x68] sm:$0xff]
    %v1865 = vld [vmem:[#allocation10 + $0x70] sm:$0xff]
    %v1866 = vld [vmem:[#allocation10 + $0x78] sm:$0xff]
    %1867 = vmatprep.subr.mxu0 0.0
    %1868 = vmatpush1.msra.mxu0 %v1851
    %1869 = vmatprep.subr.mxu0 0.0
    %1870 = vmatpush1.msra.mxu0 %v1852
    %1871 = vmatprep.subr.mxu0 0.0
    %1872 = vmatpush1.msra.mxu0 %v1853
    %1873 = vmatprep.subr.mxu0 0.0
    %1874 = vmatpush1.msra.mxu0 %v1854
    %1875 = vmatprep.subr.mxu0 0.0
    %1876 = vmatpush1.msra.mxu0 %v1855
    %1877 = vmatprep.subr.mxu0 0.0
    %1878 = vmatpush1.msra.mxu0 %v1856
    %1879 = vmatprep.subr.mxu0 0.0
    %1880 = vmatpush1.msra.mxu0 %v1857
    %1881 = vmatprep.subr.mxu0 0.0
    %1882 = vmatpush1.msra.mxu0 %v1858
    %1883 = vmatprep.subr.mxu0 0.0
    %1884 = vmatpush1.msra.mxu0 %v1859
    %1885 = vmatprep.subr.mxu0 0.0
    %1886 = vmatpush1.msra.mxu0 %v1860
    %1887 = vmatprep.subr.mxu0 0.0
    %1888 = vmatpush1.msra.mxu0 %v1861
    %1889 = vmatprep.subr.mxu0 0.0
    %1890 = vmatpush1.msra.mxu0 %v1862
    %1891 = vmatprep.subr.mxu0 0.0
    %1892 = vmatpush1.msra.mxu0 %v1863
    %1893 = vmatprep.subr.mxu0 0.0
    %1894 = vmatpush1.msra.mxu0 %v1864
    %1895 = vmatprep.subr.mxu0 0.0
    %1896 = vmatpush1.msra.mxu0 %v1865
    %1897 = vmatprep.subr.mxu0 0.0
    %1898 = vmatpush1.msra.mxu0 %v1866
    %1899 = vmatprep.subr.mxu0 0.0
    %1900 = vmatpush1.msra.mxu0 0.0
    %1901 = vmatprep.subr.mxu0 0.0
    %1902 = vmatpush1.msra.mxu0 0.0
    %1903 = vmatprep.subr.mxu0 0.0
    %1904 = vmatpush1.msra.mxu0 0.0
    %1905 = vmatprep.subr.mxu0 0.0
    %1906 = vmatpush1.msra.mxu0 0.0
    %1907 = vmatprep.subr.mxu0 0.0
    %1908 = vmatpush1.msra.mxu0 0.0
    %1909 = vmatprep.subr.mxu0 0.0
    %1910 = vmatpush1.msra.mxu0 0.0
    %1911 = vmatprep.subr.mxu0 0.0
    %1912 = vmatpush1.msra.mxu0 0.0
    %1913 = vmatprep.subr.mxu0 0.0
    %1914 = vmatpush1.msra.mxu0 0.0
    %1915 = vmatprep.subr.mxu0 0.0
    %1916 = vmatpush1.msra.mxu0 0.0
    %1917 = vmatprep.subr.mxu0 0.0
    %1918 = vmatpush1.msra.mxu0 0.0
    %1919 = vmatprep.subr.mxu0 0.0
    %1920 = vmatpush1.msra.mxu0 0.0
    %1921 = vmatprep.subr.mxu0 0.0
    %1922 = vmatpush1.msra.mxu0 0.0
    %1923 = vmatprep.subr.mxu0 0.0
    %1924 = vmatpush1.msra.mxu0 0.0
    %1925 = vmatprep.subr.mxu0 0.0
    %1926 = vmatpush1.msra.mxu0 0.0
    %1927 = vmatprep.subr.mxu0 0.0
    %1928 = vmatpush1.msra.mxu0 0.0
    %1929 = vmatprep.subr.mxu0 0.0
    %1930 = vmatpush1.msra.mxu0 0.0
    %1931 = vmatprep.mubr.f32.mxu0 0.0
    %1932 = vmatmul.mubr.f32.gmra.mrb[0].mxu0 %v1843
    %v1933 = vpop.f32.mrb[0].mxu0
    %v1934 = vadd.f32 0.0, %v1933
    %v1935 = vpop.f32.mrb[0].mxu0
    %1936 = vmatprep.mubr.f32.mxu0 0.0
    %1937 = vmatmul.mubr.f32.gmra.mrb[0].mxu0 %v1844
    %v1938 = vpop.f32.mrb[0].mxu0
    %v1939 = vadd.f32 0.0, %v1938
    %v1940 = vpop.f32.mrb[0].mxu0
    %1941 = vmatprep.mubr.f32.mxu0 0.0
    %1942 = vmatmul.mubr.f32.gmra.mrb[0].mxu0 %v1845
    %v1943 = vpop.f32.mrb[0].mxu0
    %v1944 = vadd.f32 0.0, %v1943
    %v1945 = vpop.f32.mrb[0].mxu0
    %1946 = vmatprep.mubr.f32.mxu0 0.0
    %1947 = vmatmul.mubr.f32.gmra.mrb[0].mxu0 %v1846
    %v1948 = vpop.f32.mrb[0].mxu0
    %v1949 = vadd.f32 0.0, %v1948
    %v1950 = vpop.f32.mrb[0].mxu0
    %1951 = vmatprep.mubr.f32.mxu0 0.0
    %1952 = vmatmul.mubr.f32.gmra.mrb[0].mxu0 %v1847
    %v1953 = vpop.f32.mrb[0].mxu0
    %v1954 = vadd.f32 0.0, %v1953
    %v1955 = vpop.f32.mrb[0].mxu0
    %1956 = vmatprep.mubr.f32.mxu0 0.0
    %1957 = vmatmul.mubr.f32.gmra.mrb[0].mxu0 %v1848
    %v1958 = vpop.f32.mrb[0].mxu0
    %v1959 = vadd.f32 0.0, %v1958
    %v1960 = vpop.f32.mrb[0].mxu0
    %1961 = vmatprep.mubr.f32.mxu0 0.0
    %1962 = vmatmul.mubr.f32.gmra.mrb[0].mxu0 %v1849
    %v1963 = vpop.f32.mrb[0].mxu0
    %v1964 = vadd.f32 0.0, %v1963
    %v1965 = vpop.f32.mrb[0].mxu0
    %1966 = vmatprep.mubr.f32.mxu0 0.0
    %1967 = vmatmul.mubr.f32.gmra.mrb[0].mxu0 %v1850
    %v1968 = vpop.f32.mrb[0].mxu0
    %v1969 = vadd.f32 0.0, %v1968
    %v1970 = vpop.f32.mrb[0].mxu0
    %1971 = vdwg.mxu0
    %1972 = vmatprep.subr.mxu0 0.0
    %1973 = vmatpush1.msra.mxu0 %v1827
    %1974 = vmatprep.subr.mxu0 0.0
    %1975 = vmatpush1.msra.mxu0 %v1828
    %1976 = vmatprep.subr.mxu0 0.0
    %1977 = vmatpush1.msra.mxu0 %v1829
    %1978 = vmatprep.subr.mxu0 0.0
    %1979 = vmatpush1.msra.mxu0 %v1830
    %1980 = vmatprep.subr.mxu0 0.0
    %1981 = vmatpush1.msra.mxu0 %v1831
    %1982 = vmatprep.subr.mxu0 0.0
    %1983 = vmatpush1.msra.mxu0 %v1832
    %1984 = vmatprep.subr.mxu0 0.0
    %1985 = vmatpush1.msra.mxu0 %v1833
    %1986 = vmatprep.subr.mxu0 0.0
    %1987 = vmatpush1.msra.mxu0 %v1834
    %1988 = vmatprep.subr.mxu0 0.0
    %1989 = vmatpush1.msra.mxu0 %v1835
    %1990 = vmatprep.subr.mxu0 0.0
    %1991 = vmatpush1.msra.mxu0 %v1836
    %1992 = vmatprep.subr.mxu0 0.0
    %1993 = vmatpush1.msra.mxu0 %v1837
    %1994 = vmatprep.subr.mxu0 0.0
    %1995 = vmatpush1.msra.mxu0 %v1838
    %1996 = vmatprep.subr.mxu0 0.0
    %1997 = vmatpush1.msra.mxu0 %v1839
    %1998 = vmatprep.subr.mxu0 0.0
    %1999 = vmatpush1.msra.mxu0 %v1840
    %2000 = vmatprep.subr.mxu0 0.0
    %2001 = vmatpush1.msra.mxu0 %v1841
    %2002 = vmatprep.subr.mxu0 0.0
    %2003 = vmatpush1.msra.mxu0 %v1842
    %2004 = vmatprep.subr.mxu0 0.0
    %2005 = vmatpush1.msra.mxu0 0.0
    %2006 = vmatprep.subr.mxu0 0.0
    %2007 = vmatpush1.msra.mxu0 0.0
    %2008 = vmatprep.subr.mxu0 0.0
    %2009 = vmatpush1.msra.mxu0 0.0
    %2010 = vmatprep.subr.mxu0 0.0
    %2011 = vmatpush1.msra.mxu0 0.0
    %2012 = vmatprep.subr.mxu0 0.0
    %2013 = vmatpush1.msra.mxu0 0.0
    %2014 = vmatprep.subr.mxu0 0.0
    %2015 = vmatpush1.msra.mxu0 0.0
    %2016 = vmatprep.subr.mxu0 0.0
    %2017 = vmatpush1.msra.mxu0 0.0
    %2018 = vmatprep.subr.mxu0 0.0
    %2019 = vmatpush1.msra.mxu0 0.0
    %2020 = vmatprep.subr.mxu0 0.0
    %2021 = vmatpush1.msra.mxu0 0.0
    %2022 = vmatprep.subr.mxu0 0.0
    %2023 = vmatpush1.msra.mxu0 0.0
    %2024 = vmatprep.subr.mxu0 0.0
    %2025 = vmatpush1.msra.mxu0 0.0
    %2026 = vmatprep.subr.mxu0 0.0
    %2027 = vmatpush1.msra.mxu0 0.0
    %2028 = vmatprep.subr.mxu0 0.0
    %2029 = vmatpush1.msra.mxu0 0.0
    %2030 = vmatprep.subr.mxu0 0.0
    %2031 = vmatpush1.msra.mxu0 0.0
    %2032 = vmatprep.subr.mxu0 0.0
    %2033 = vmatpush1.msra.mxu0 0.0
    %2034 = vmatprep.subr.mxu0 0.0
    %2035 = vmatpush1.msra.mxu0 0.0
    %2036 = vmatprep.mubr.f32.mxu0 0.0
    %2037 = vmatmul.mubr.f32.gmra.mrb[0].mxu0 %v1819
    %v2038 = vpop.f32.mrb[0].mxu0
    %v2039 = vadd.f32 %v1934, %v2038
    %v2040 = vpop.f32.mrb[0].mxu0
    %2041 = vmatprep.mubr.f32.mxu0 0.0
    %2042 = vmatmul.mubr.f32.gmra.mrb[0].mxu0 %v1820
    %v2043 = vpop.f32.mrb[0].mxu0
    %v2044 = vadd.f32 %v1939, %v2043
    %v2045 = vpop.f32.mrb[0].mxu0
    %2046 = vmatprep.mubr.f32.mxu0 0.0
    %2047 = vmatmul.mubr.f32.gmra.mrb[0].mxu0 %v1821
    %v2048 = vpop.f32.mrb[0].mxu0
    %v2049 = vadd.f32 %v1944, %v2048
    %v2050 = vpop.f32.mrb[0].mxu0
    %2051 = vmatprep.mubr.f32.mxu0 0.0
    %2052 = vmatmul.mubr.f32.gmra.mrb[0].mxu0 %v1822
    %v2053 = vpop.f32.mrb[0].mxu0
    %v2054 = vadd.f32 %v1949, %v2053
    %v2055 = vpop.f32.mrb[0].mxu0
    %2056 = vmatprep.mubr.f32.mxu0 0.0
    %2057 = vmatmul.mubr.f32.gmra.mrb[0].mxu0 %v1823
    %v2058 = vpop.f32.mrb[0].mxu0
    %v2059 = vadd.f32 %v1954, %v2058
    %v2060 = vpop.f32.mrb[0].mxu0
    %2061 = vmatprep.mubr.f32.mxu0 0.0
    %2062 = vmatmul.mubr.f32.gmra.mrb[0].mxu0 %v1824
    %v2063 = vpop.f32.mrb[0].mxu0
    %v2064 = vadd.f32 %v1959, %v2063
    %v2065 = vpop.f32.mrb[0].mxu0
    %2066 = vmatprep.mubr.f32.mxu0 0.0
    %2067 = vmatmul.mubr.f32.gmra.mrb[0].mxu0 %v1825
    %v2068 = vpop.f32.mrb[0].mxu0
    %v2069 = vadd.f32 %v1964, %v2068
    %v2070 = vpop.f32.mrb[0].mxu0
    %2071 = vmatprep.mubr.f32.mxu0 0.0
    %2072 = vmatmul.mubr.f32.gmra.mrb[0].mxu0 %v1826
    %v2073 = vpop.f32.mrb[0].mxu0
    %v2074 = vadd.f32 %v1969, %v2073
    %v2075 = vpop.f32.mrb[0].mxu0
    %2076 = vdwg.mxu0
    %v2077 = vld [vmem:[%s6] sm:$0x1]
    %v2079 = vlaneseq
    %v2080 = vshrl.u32 %v2079, 7
    %v2081 = vsub.s32 0, %v2080
    %v2082 = vrot.slane %v2077, %v2081
    %v2084 = vadd.f32 %v2039, %v2082
    %v2085 = vadd.f32 %v2044, %v2082
    %v2086 = vadd.f32 %v2049, %v2082
    %v2087 = vadd.f32 %v2054, %v2082
    %v2088 = vadd.f32 %v2059, %v2082
    %v2089 = vadd.f32 %v2064, %v2082
    %v2090 = vadd.f32 %v2069, %v2082
    %v2091 = vadd.f32 %v2074, %v2082
    %2092 = vst [vmem:[#allocation12] sm:$0xff] %v2084
    %2093 = vst [vmem:[#allocation12 + $0x8] sm:$0xff] %v2085
    %2094 = vst [vmem:[#allocation12 + $0x10] sm:$0xff] %v2086
    %2095 = vst [vmem:[#allocation12 + $0x18] sm:$0xff] %v2087
    %2096 = vst [vmem:[#allocation12 + $0x20] sm:$0xff] %v2088
    %2097 = vst [vmem:[#allocation12 + $0x28] sm:$0xff] %v2089
    %2098 = vst [vmem:[#allocation12 + $0x30] sm:$0xff] %v2090
    %2099 = vst [vmem:[#allocation12 + $0x38] sm:$0xff] %v2091
    // Predicated region
    $region46: #{tpu_custom_call.1} parent=1 // pred_check
      _
    $region47: #{tpu_custom_call.1} parent=1 // pred_check_branch
      %2101 = sbr.rel (0) target = $region49
    $region48: #{tpu_custom_call.1} parent=1 // pred_region
      %s2103 = ssub.s32 1024, 1024
      %2104 = vsyncadd [#allocation6], %s2103
      %s2105 = sshll.u32 [#allocation12], 4
      %s2106 = int_to_ptr.vmem [resolvable:$true] %s2105
      %2111 = dma.vmem_to_hbm [thread:$0]  %s2106, 1024, %s7, [#allocation6], 128, 128, 8
    $region49: #{tpu_custom_call.1} parent=1 // pred_fallthru
      _
    // Predicated region
    $region50: #{tpu_custom_call.1} parent=1 // pred_check
      _
    $region51: #{tpu_custom_call.1} parent=1 // pred_check_branch
      %2113 = sbr.rel (0) target = $region53
    $region52: #{tpu_custom_call.1} parent=1 // pred_region
      %2114 = dma.done [#allocation6], 1024
    $region53: #{tpu_custom_call.1} parent=1 // pred_fallthru
      _
    %2115 = vsyncpa [#allocation5], 1
    %2116 = vsyncpa [#allocation8], 1
    %2117 = vsyncpa [#allocation11], 1
    %2118 = vsyncpa [#allocation6], 1

</llo_original>
